<compile_context>
chip_gen: v6e
topology: v6e:2x2x1
jax: 0.10.0
libtpu: 0.0.40
codegen_flags: <defaults>
</compile_context>

<pallas_src>
import jax
import jax.numpy as jnp
from jax.experimental import pallas as pl
from jax.experimental.pallas import tpu as pltpu


# ----------------------------------------------------------------------------
# Hoisted input projection: one big matmul  gx = x @ W + b   (bf16 -> f32).
# At demo sizes a single full-array block is used; at production sizes this is
# the standard row/col-tiled matmul pattern.
# ----------------------------------------------------------------------------
def dense_kernel(x_ref, w_ref, b_ref, o_ref):
    o_ref[...] = (jnp.dot(x_ref[...], w_ref[...],
                          preferred_element_type=jnp.float32)
                  + b_ref[...]).astype(o_ref.dtype)


def dense(x, w, b):
    M = x.shape[0]
    N = w.shape[1]
    return pl.pallas_call(
        dense_kernel,
        out_shape=jax.ShapeDtypeStruct((M, N), jnp.float32),
    )(x, w, b)


# ----------------------------------------------------------------------------
# Fused bidirectional LSTM recurrence, time-chunked.
# Inputs are the precomputed input-projection gates (x@W_ih + b) for each
# direction; the kernel only does the serial  h @ W_hh  part + element-wise.
# Gate order matches PyTorch: i, f, g, o.
# ----------------------------------------------------------------------------
def bilstm_chunk_kernel(gxf_ref, gxb_ref, whhf_ref, whhb_ref,
                        outf_ref, outb_ref,
                        hf_sc, cf_sc, hb_sc, cb_sc):
    c = pl.program_id(0)
    Tc = gxf_ref.shape[0]
    H = hf_sc.shape[-1]

    @pl.when(c == 0)
    def _():
        hf_sc[...] = jnp.zeros_like(hf_sc)
        cf_sc[...] = jnp.zeros_like(cf_sc)
        hb_sc[...] = jnp.zeros_like(hb_sc)
        cb_sc[...] = jnp.zeros_like(cb_sc)

    # Weights stay VMEM-resident across the whole chunk (constant index_map).
    w_f = whhf_ref[...]
    w_b = whhb_ref[...]

    def cell(gx, h, c_state, w_hh):
        # Recurrent matmul in bf16 on the MXU, accumulate/element-wise in f32.
        gates = gx + jnp.dot(h.astype(w_hh.dtype), w_hh,
                             preferred_element_type=jnp.float32)
        # NOTE: for H a multiple of 128 these slices are lane-aligned.
        i_g = jax.nn.sigmoid(gates[:, 0 * H:1 * H])
        f_g = jax.nn.sigmoid(gates[:, 1 * H:2 * H])
        g_g = jnp.tanh(gates[:, 2 * H:3 * H])
        o_g = jax.nn.sigmoid(gates[:, 3 * H:4 * H])
        c_new = f_g * c_state + i_g * g_g
        h_new = o_g * jnp.tanh(c_new)
        return h_new, c_new

    def step(s, carry):
        hf, cf, hb, cb = carry
        # Forward direction: within-chunk time s.
        hf, cf = cell(gxf_ref[s], hf, cf, w_f)
        outf_ref[s] = hf.astype(outf_ref.dtype)
        # Backward direction: reversed within the (already reversed) chunk.
        sr = Tc - 1 - s
        hb, cb = cell(gxb_ref[sr], hb, cb, w_b)
        outb_ref[sr] = hb.astype(outb_ref.dtype)
        return hf, cf, hb, cb

    # h/c carried in vregs across the chunk; scratch touched only at the
    # chunk boundary so state persists across grid steps.
    hf, cf, hb, cb = jax.lax.fori_loop(
        0, Tc, step,
        (hf_sc[...], cf_sc[...], hb_sc[...], cb_sc[...]),
        unroll=True)

    hf_sc[...] = hf
    cf_sc[...] = cf
    hb_sc[...] = hb
    cb_sc[...] = cb


def bilstm_recurrence(gxf, gxb, w_hh_f, w_hh_b, *, time_chunk=16):
    """gxf/gxb: [T, B, 4H] f32 precomputed input gates (fwd / bwd direction).
    w_hh_*: [H, 4H] bf16.  Returns (out_f, out_b) each [T, B, H] f32."""
    T, B, G = gxf.shape
    H = w_hh_f.shape[0]
    assert G == 4 * H

    # Largest chunk <= time_chunk that divides T.
    Tc = min(T, time_chunk)
    while T % Tc:
        Tc -= 1
    C = T // Tc

    out_f, out_b = pl.pallas_call(
        bilstm_chunk_kernel,
        out_shape=(jax.ShapeDtypeStruct((T, B, H), jnp.float32),
                   jax.ShapeDtypeStruct((T, B, H), jnp.float32)),
        grid_spec=pltpu.PrefetchScalarGridSpec(
            num_scalar_prefetch=0,
            grid=(C,),
            in_specs=[
                pl.BlockSpec((Tc, B, 4 * H), lambda c: (c, 0, 0)),
                pl.BlockSpec((Tc, B, 4 * H), lambda c: (C - 1 - c, 0, 0)),
                pl.BlockSpec((H, 4 * H), lambda c: (0, 0)),
                pl.BlockSpec((H, 4 * H), lambda c: (0, 0)),
            ],
            out_specs=[
                pl.BlockSpec((Tc, B, H), lambda c: (c, 0, 0)),
                pl.BlockSpec((Tc, B, H), lambda c: (C - 1 - c, 0, 0)),
            ],
            scratch_shapes=[
                pltpu.VMEM((B, H), jnp.float32),   # h forward
                pltpu.VMEM((B, H), jnp.float32),   # c forward
                pltpu.VMEM((B, H), jnp.float32),   # h backward
                pltpu.VMEM((B, H), jnp.float32),   # c backward
            ]),
        compiler_params=pltpu.CompilerParams(
            dimension_semantics=("arbitrary",),     # serial recurrence in time
            vmem_limit_bytes=32 * 1024 * 1024),
    )(gxf, gxb, w_hh_f, w_hh_b)
    return out_f, out_b


# ----------------------------------------------------------------------------
# Full model forward (matches RNN.forward in eval mode, dropout = identity).
# ----------------------------------------------------------------------------
def rnn_forward(params, x_tokens):
    T, B = x_tokens.shape
    embedded = jnp.take(params["embedding"], x_tokens, axis=0)    # [T, B, E]
    # TODO(synk): dropout omitted (inference-mode identity).

    # Pad batch to a sublane group (multiple of 8) for MXU/vreg packing.
    B_pad = max(8, -(-B // 8) * 8)
    if B_pad != B:
        embedded = jnp.pad(embedded, ((0, 0), (0, B_pad - B), (0, 0)))

    layer_in = embedded.astype(jnp.bfloat16)                      # [T, Bp, D]
    out_f = out_b = None
    for layer in params["lstm"]:
        D_in = layer_in.shape[-1]
        H = layer["w_hh_f"].shape[0]
        # 1) Hoisted input projection for BOTH directions in one big matmul.
        gx = dense(layer_in.reshape(T * B_pad, D_in),
                   layer["w_ih_all"], layer["b_all"])             # [T*Bp, 8H]
        gx = gx.reshape(T, B_pad, 8 * H)
        # 2) Fused bidirectional recurrence (only h @ W_hh inside).
        out_f, out_b = bilstm_recurrence(
            gx[..., :4 * H], gx[..., 4 * H:],
            layer["w_hh_f"], layer["w_hh_b"])
        layer_in = jnp.concatenate([out_f, out_b], axis=-1).astype(jnp.bfloat16)

    # hidden[-2] = forward final h (= out_f at last time step),
    # hidden[-1] = backward final h (= out_b at time 0, processed last).
    hidden = jnp.concatenate([out_f[-1], out_b[0]], axis=-1)      # [Bp, 2H]
    # Final Linear left to XLA (tiny; a pallas_call here is pure overhead).
    logits = hidden @ params["fc_w"] + params["fc_b"]             # [Bp, O]
    return logits[:B]


# ----------------------------------------------------------------------------
# Deterministic parameter init (PyTorch-style uniform(-1/sqrt(H), 1/sqrt(H))).
# Matmul weights stored pre-transposed and cast to bf16; biases kept f32.
# ----------------------------------------------------------------------------
def init_params(key, vocab_size, embedding_dim, hidden_dim, output_dim, n_layers):
    H = hidden_dim
    keys = jax.random.split(key, 2 + n_layers)
    emb = jax.random.normal(keys[0], (vocab_size, embedding_dim), jnp.float32)

    bound = 1.0 / float(H) ** 0.5
    lstm_layers = []
    for l in range(n_layers):
        d_in = embedding_dim if l == 0 else 2 * H
        sub = jax.random.split(keys[2 + l], 8)
        u = lambda k, shape: jax.random.uniform(k, shape, jnp.float32, -bound, bound)
        w_ih_f = u(sub[0], (d_in, 4 * H))
        w_hh_f = u(sub[1], (H, 4 * H))
        b_f = u(sub[2], (1, 4 * H)) + u(sub[3], (1, 4 * H))       # b_ih + b_hh
        w_ih_b = u(sub[4], (d_in, 4 * H))
        w_hh_b = u(sub[5], (H, 4 * H))
        b_b = u(sub[6], (1, 4 * H)) + u(sub[7], (1, 4 * H))
        lstm_layers.append(dict(
            # Both directions' input-projection weights stacked: [D_in, 8H].
            w_ih_all=jnp.concatenate([w_ih_f, w_ih_b], axis=1).astype(jnp.bfloat16),
            b_all=jnp.concatenate([b_f, b_b], axis=1),            # [1, 8H] f32
            w_hh_f=w_hh_f.astype(jnp.bfloat16),                   # [H, 4H]
            w_hh_b=w_hh_b.astype(jnp.bfloat16),
        ))

    fc_kw, fc_kb = jax.random.split(keys[1])
    fb = 1.0 / float(2 * H) ** 0.5
    fc_w = jax.random.uniform(fc_kw, (2 * H, output_dim), jnp.float32, -fb, fb)
    fc_b = jax.random.uniform(fc_kb, (output_dim,), jnp.float32, -fb, fb)

    return dict(embedding=emb, lstm=lstm_layers, fc_w=fc_w, fc_b=fc_b)


if __name__ == "__main__":
    vocab_size = 50
    embedding_dim = 16
    hidden_dim = 32
    output_dim = 2
    n_layers = 2
    seq_len = 8
    batch = 2

    key = jax.random.PRNGKey(0)
    key_p, key_x = jax.random.split(key)
    params = init_params(key_p, vocab_size, embedding_dim, hidden_dim,
                         output_dim, n_layers)

    # Token input: [seq_len, batch] int32 (PyTorch seq-first convention).
    x = jax.random.randint(key_x, (seq_len, batch), 0, vocab_size, dtype=jnp.int32)

    fwd = jax.jit(rnn_forward)
    logits = fwd(params, x)
    jax.block_until_ready(logits)
    assert logits.shape == (batch, output_dim)
    print("KERNEL_OK")
</pallas_src>

<mosaic_0001>
module attributes {stable_mosaic.version = 11 : i64} {
  func.func @dense_kernel(%arg0: memref<64x16xbf16, #tpu.memory_space<vmem>>, %arg1: memref<16x256xbf16, #tpu.memory_space<vmem>>, %arg2: memref<1x256xf32, #tpu.memory_space<vmem>>, %arg3: memref<64x256xf32, #tpu.memory_space<vmem>>) attributes {dimension_semantics = [], scalar_prefetch = 0 : i64, scratch_operands = 0 : i64, tpu.core_type = #tpu.core_type<tc>} {
    %c0 = arith.constant 0 : index
    %c0_0 = arith.constant 0 : index
    %0 = vector.load %arg0[%c0, %c0_0] : memref<64x16xbf16, #tpu.memory_space<vmem>>, vector<64x16xbf16>
    %c0_1 = arith.constant 0 : index
    %c0_2 = arith.constant 0 : index
    %1 = vector.load %arg1[%c0_1, %c0_2] : memref<16x256xbf16, #tpu.memory_space<vmem>>, vector<16x256xbf16>
    %cst = arith.constant dense<0.000000e+00> : vector<64x256xf32>
    %2 = tpu.matmul %0, %1, %cst {dimension_numbers = #tpu.dot_dimension_numbers<[1], [0], [0], [1], [0, 0, 1, 1], [], []>} : vector<64x16xbf16>, vector<16x256xbf16>, vector<64x256xf32> -> vector<64x256xf32>
    %c0_3 = arith.constant 0 : index
    %c0_4 = arith.constant 0 : index
    %3 = vector.load %arg2[%c0_3, %c0_4] : memref<1x256xf32, #tpu.memory_space<vmem>>, vector<1x256xf32>
    %4 = vector.broadcast %3 : vector<1x256xf32> to vector<64x256xf32>
    %5 = arith.addf %2, %4 : vector<64x256xf32>
    %c0_5 = arith.constant 0 : index
    %c0_6 = arith.constant 0 : index
    %6 = vector.load %arg3[%c0_5, %c0_6] : memref<64x256xf32, #tpu.memory_space<vmem>>, vector<64x256xf32>
    tpu.vector_store %arg3[%c0_5, %c0_6], %5 {strides = array<i32>} : memref<64x256xf32, #tpu.memory_space<vmem>>, vector<64x256xf32>,
    return
  }
}

module attributes {stable_mosaic.version = 11 : i64} {
  func.func @dense_kernel(%arg0: memref<64x64xbf16, #tpu.memory_space<vmem>>, %arg1: memref<64x256xbf16, #tpu.memory_space<vmem>>, %arg2: memref<1x256xf32, #tpu.memory_space<vmem>>, %arg3: memref<64x256xf32, #tpu.memory_space<vmem>>) attributes {dimension_semantics = [], scalar_prefetch = 0 : i64, scratch_operands = 0 : i64, tpu.core_type = #tpu.core_type<tc>} {
    %c0 = arith.constant 0 : index
    %c0_0 = arith.constant 0 : index
    %0 = vector.load %arg0[%c0, %c0_0] : memref<64x64xbf16, #tpu.memory_space<vmem>>, vector<64x64xbf16>
    %c0_1 = arith.constant 0 : index
    %c0_2 = arith.constant 0 : index
    %1 = vector.load %arg1[%c0_1, %c0_2] : memref<64x256xbf16, #tpu.memory_space<vmem>>, vector<64x256xbf16>
    %cst = arith.constant dense<0.000000e+00> : vector<64x256xf32>
    %2 = tpu.matmul %0, %1, %cst {dimension_numbers = #tpu.dot_dimension_numbers<[1], [0], [0], [1], [0, 0, 1, 1], [], []>} : vector<64x64xbf16>, vector<64x256xbf16>, vector<64x256xf32> -> vector<64x256xf32>
    %c0_3 = arith.constant 0 : index
    %c0_4 = arith.constant 0 : index
    %3 = vector.load %arg2[%c0_3, %c0_4] : memref<1x256xf32, #tpu.memory_space<vmem>>, vector<1x256xf32>
    %4 = vector.broadcast %3 : vector<1x256xf32> to vector<64x256xf32>
    %5 = arith.addf %2, %4 : vector<64x256xf32>
    %c0_5 = arith.constant 0 : index
    %c0_6 = arith.constant 0 : index
    %6 = vector.load %arg3[%c0_5, %c0_6] : memref<64x256xf32, #tpu.memory_space<vmem>>, vector<64x256xf32>
    tpu.vector_store %arg3[%c0_5, %c0_6], %5 {strides = array<i32>} : memref<64x256xf32, #tpu.memory_space<vmem>>, vector<64x256xf32>,
    return
  }
}

module attributes {stable_mosaic.version = 11 : i64} {
  func.func @bilstm_chunk_kernel(%arg0: i32, %arg1: memref<8x8x128xf32, #tpu.memory_space<vmem>>, %arg2: memref<8x8x128xf32, #tpu.memory_space<vmem>>, %arg3: memref<32x128xbf16, #tpu.memory_space<vmem>>, %arg4: memref<32x128xbf16, #tpu.memory_space<vmem>>, %arg5: memref<8x8x32xf32, #tpu.memory_space<vmem>>, %arg6: memref<8x8x32xf32, #tpu.memory_space<vmem>>, %arg7: memref<8x32xf32, #tpu.memory_space<vmem>>, %arg8: memref<8x32xf32, #tpu.memory_space<vmem>>, %arg9: memref<8x32xf32, #tpu.memory_space<vmem>>, %arg10: memref<8x32xf32, #tpu.memory_space<vmem>>) attributes {dimension_semantics = [#tpu.dimension_semantics<arbitrary>], iteration_bounds = array<i64: 1>, scalar_prefetch = 0 : i64, scratch_operands = 4 : i64, tpu.core_type = #tpu.core_type<tc>, window_params = [{transform_indices = @transform_0, window_bounds = array<i64: 8, 8, 128>}, {transform_indices = @transform_1, window_bounds = array<i64: 8, 8, 128>}, {pipeline_mode = #tpu.pipeline_mode<synchronous>, transform_indices = @transform_2, window_bounds = array<i64: 32, 128>}, {pipeline_mode = #tpu.pipeline_mode<synchronous>, transform_indices = @transform_3, window_bounds = array<i64: 32, 128>}, {transform_indices = @transform_4, window_bounds = array<i64: 8, 8, 32>}, {transform_indices = @transform_5, window_bounds = array<i64: 8, 8, 32>}]} {
    %c0_i32 = arith.constant 0 : i32
    %0 = arith.cmpi eq, %arg0, %c0_i32 : i32
    %1 = arith.extui %0 : i1 to i32
    %c0_i32_0 = arith.constant 0 : i32
    %2 = arith.cmpi ne, %1, %c0_i32_0 : i32
    scf.if %2 {
      %cst_156 = arith.constant 0.000000e+00 : f32
      %581 = vector.broadcast %cst_156 : f32 to vector<8x32xf32>
      %c0_157 = arith.constant 0 : index
      %c0_158 = arith.constant 0 : index
      %582 = vector.load %arg7[%c0_157, %c0_158] : memref<8x32xf32, #tpu.memory_space<vmem>>, vector<8x32xf32>
      tpu.vector_store %arg7[%c0_157, %c0_158], %581 {strides = array<i32>} : memref<8x32xf32, #tpu.memory_space<vmem>>, vector<8x32xf32>,
      %cst_159 = arith.constant 0.000000e+00 : f32
      %583 = vector.broadcast %cst_159 : f32 to vector<8x32xf32>
      %c0_160 = arith.constant 0 : index
      %c0_161 = arith.constant 0 : index
      %584 = vector.load %arg8[%c0_160, %c0_161] : memref<8x32xf32, #tpu.memory_space<vmem>>, vector<8x32xf32>
      tpu.vector_store %arg8[%c0_160, %c0_161], %583 {strides = array<i32>} : memref<8x32xf32, #tpu.memory_space<vmem>>, vector<8x32xf32>,
      %cst_162 = arith.constant 0.000000e+00 : f32
      %585 = vector.broadcast %cst_162 : f32 to vector<8x32xf32>
      %c0_163 = arith.constant 0 : index
      %c0_164 = arith.constant 0 : index
      %586 = vector.load %arg9[%c0_163, %c0_164] : memref<8x32xf32, #tpu.memory_space<vmem>>, vector<8x32xf32>
      tpu.vector_store %arg9[%c0_163, %c0_164], %585 {strides = array<i32>} : memref<8x32xf32, #tpu.memory_space<vmem>>, vector<8x32xf32>,
      %cst_165 = arith.constant 0.000000e+00 : f32
      %587 = vector.broadcast %cst_165 : f32 to vector<8x32xf32>
      %c0_166 = arith.constant 0 : index
      %c0_167 = arith.constant 0 : index
      %588 = vector.load %arg10[%c0_166, %c0_167] : memref<8x32xf32, #tpu.memory_space<vmem>>, vector<8x32xf32>
      tpu.vector_store %arg10[%c0_166, %c0_167], %587 {strides = array<i32>} : memref<8x32xf32, #tpu.memory_space<vmem>>, vector<8x32xf32>,
    } else {
    }
    %c0 = arith.constant 0 : index
    %c0_1 = arith.constant 0 : index
    %3 = vector.load %arg3[%c0, %c0_1] : memref<32x128xbf16, #tpu.memory_space<vmem>>, vector<32x128xbf16>
    %c0_2 = arith.constant 0 : index
    %c0_3 = arith.constant 0 : index
    %4 = vector.load %arg4[%c0_2, %c0_3] : memref<32x128xbf16, #tpu.memory_space<vmem>>, vector<32x128xbf16>
    %c0_4 = arith.constant 0 : index
    %c0_5 = arith.constant 0 : index
    %5 = vector.load %arg7[%c0_4, %c0_5] : memref<8x32xf32, #tpu.memory_space<vmem>>, vector<8x32xf32>
    %c0_6 = arith.constant 0 : index
    %c0_7 = arith.constant 0 : index
    %6 = vector.load %arg8[%c0_6, %c0_7] : memref<8x32xf32, #tpu.memory_space<vmem>>, vector<8x32xf32>
    %c0_8 = arith.constant 0 : index
    %c0_9 = arith.constant 0 : index
    %7 = vector.load %arg9[%c0_8, %c0_9] : memref<8x32xf32, #tpu.memory_space<vmem>>, vector<8x32xf32>
    %c0_10 = arith.constant 0 : index
    %c0_11 = arith.constant 0 : index
    %8 = vector.load %arg10[%c0_10, %c0_11] : memref<8x32xf32, #tpu.memory_space<vmem>>, vector<8x32xf32>
    %c0_i32_12 = arith.constant 0 : i32
    %9 = arith.index_cast %c0_i32_12 : i32 to index
    %c0_13 = arith.constant 0 : index
    %c0_14 = arith.constant 0 : index
    %10 = vector.load %arg1[%9, %c0_13, %c0_14] : memref<8x8x128xf32, #tpu.memory_space<vmem>>, vector<1x8x128xf32>
    %11 = vector.shape_cast %10 : vector<1x8x128xf32> to vector<8x128xf32>
    %12 = arith.truncf %5 : vector<8x32xf32> to vector<8x32xbf16>
    %cst = arith.constant dense<0.000000e+00> : vector<8x128xf32>
    %13 = tpu.matmul %12, %3, %cst {dimension_numbers = #tpu.dot_dimension_numbers<[1], [0], [0], [1], [0, 0, 1, 1], [], []>} : vector<8x32xbf16>, vector<32x128xbf16>, vector<8x128xf32> -> vector<8x128xf32>
    %14 = arith.addf %11, %13 : vector<8x128xf32>
    %15 = vector.extract_strided_slice %14 {offsets = [0, 0], sizes = [8, 32], strides = [1, 1]} : vector<8x128xf32> to vector<8x32xf32>
    %16 = arith.negf %15 : vector<8x32xf32>
    %17 = math.exp %16 : vector<8x32xf32>
    %cst_15 = arith.constant 1.000000e+00 : f32
    %18 = vector.broadcast %cst_15 : f32 to vector<8x32xf32>
    %19 = arith.addf %18, %17 : vector<8x32xf32>
    %20 = arith.divf %18, %19 : vector<8x32xf32>
    %21 = vector.extract_strided_slice %14 {offsets = [0, 32], sizes = [8, 32], strides = [1, 1]} : vector<8x128xf32> to vector<8x32xf32>
    %22 = arith.negf %21 : vector<8x32xf32>
    %23 = math.exp %22 : vector<8x32xf32>
    %cst_16 = arith.constant 1.000000e+00 : f32
    %24 = vector.broadcast %cst_16 : f32 to vector<8x32xf32>
    %25 = arith.addf %24, %23 : vector<8x32xf32>
    %26 = arith.divf %24, %25 : vector<8x32xf32>
    %27 = vector.extract_strided_slice %14 {offsets = [0, 64], sizes = [8, 32], strides = [1, 1]} : vector<8x128xf32> to vector<8x32xf32>
    %28 = math.tanh %27 : vector<8x32xf32>
    %29 = vector.extract_strided_slice %14 {offsets = [0, 96], sizes = [8, 32], strides = [1, 1]} : vector<8x128xf32> to vector<8x32xf32>
    %30 = arith.negf %29 : vector<8x32xf32>
    %31 = math.exp %30 : vector<8x32xf32>
    %cst_17 = arith.constant 1.000000e+00 : f32
    %32 = vector.broadcast %cst_17 : f32 to vector<8x32xf32>
    %33 = arith.addf %32, %31 : vector<8x32xf32>
    %34 = arith.divf %32, %33 : vector<8x32xf32>
    %35 = arith.mulf %26, %6 : vector<8x32xf32>
    %36 = arith.mulf %20, %28 : vector<8x32xf32>
    %37 = arith.addf %35, %36 : vector<8x32xf32>
    %38 = math.tanh %37 : vector<8x32xf32>
    %39 = arith.mulf %34, %38 : vector<8x32xf32>
    %40 = arith.index_cast %c0_i32_12 : i32 to index
    %c0_18 = arith.constant 0 : index
    %c0_19 = arith.constant 0 : index
    %41 = vector.load %arg5[%40, %c0_18, %c0_19] : memref<8x8x32xf32, #tpu.memory_space<vmem>>, vector<1x8x32xf32>
    %42 = vector.shape_cast %41 : vector<1x8x32xf32> to vector<8x32xf32>
    %43 = vector.shape_cast %39 : vector<8x32xf32> to vector<1x8x32xf32>
    tpu.vector_store %arg5[%40, %c0_18, %c0_19], %43 {strides = array<i32>} : memref<8x8x32xf32, #tpu.memory_space<vmem>>, vector<1x8x32xf32>,
    %c7_i32 = arith.constant 7 : i32
    %44 = arith.subi %c7_i32, %c0_i32_12 : i32
    %45 = arith.index_cast %44 : i32 to index
    %c0_20 = arith.constant 0 : index
    %c0_21 = arith.constant 0 : index
    %46 = vector.load %arg2[%45, %c0_20, %c0_21] : memref<8x8x128xf32, #tpu.memory_space<vmem>>, vector<1x8x128xf32>
    %47 = vector.shape_cast %46 : vector<1x8x128xf32> to vector<8x128xf32>
    %48 = arith.truncf %7 : vector<8x32xf32> to vector<8x32xbf16>
    %cst_22 = arith.constant dense<0.000000e+00> : vector<8x128xf32>
    %49 = tpu.matmul %48, %4, %cst_22 {dimension_numbers = #tpu.dot_dimension_numbers<[1], [0], [0], [1], [0, 0, 1, 1], [], []>} : vector<8x32xbf16>, vector<32x128xbf16>, vector<8x128xf32> -> vector<8x128xf32>
    %50 = arith.addf %47, %49 : vector<8x128xf32>
    %51 = vector.extract_strided_slice %50 {offsets = [0, 0], sizes = [8, 32], strides = [1, 1]} : vector<8x128xf32> to vector<8x32xf32>
    %52 = arith.negf %51 : vector<8x32xf32>
    %53 = math.exp %52 : vector<8x32xf32>
    %cst_23 = arith.constant 1.000000e+00 : f32
    %54 = vector.broadcast %cst_23 : f32 to vector<8x32xf32>
    %55 = arith.addf %54, %53 : vector<8x32xf32>
    %56 = arith.divf %54, %55 : vector<8x32xf32>
    %57 = vector.extract_strided_slice %50 {offsets = [0, 32], sizes = [8, 32], strides = [1, 1]} : vector<8x128xf32> to vector<8x32xf32>
    %58 = arith.negf %57 : vector<8x32xf32>
    %59 = math.exp %58 : vector<8x32xf32>
    %cst_24 = arith.constant 1.000000e+00 : f32
    %60 = vector.broadcast %cst_24 : f32 to vector<8x32xf32>
    %61 = arith.addf %60, %59 : vector<8x32xf32>
    %62 = arith.divf %60, %61 : vector<8x32xf32>
    %63 = vector.extract_strided_slice %50 {offsets = [0, 64], sizes = [8, 32], strides = [1, 1]} : vector<8x128xf32> to vector<8x32xf32>
    %64 = math.tanh %63 : vector<8x32xf32>
    %65 = vector.extract_strided_slice %50 {offsets = [0, 96], sizes = [8, 32], strides = [1, 1]} : vector<8x128xf32> to vector<8x32xf32>
    %66 = arith.negf %65 : vector<8x32xf32>
    %67 = math.exp %66 : vector<8x32xf32>
    %cst_25 = arith.constant 1.000000e+00 : f32
    %68 = vector.broadcast %cst_25 : f32 to vector<8x32xf32>
    %69 = arith.addf %68, %67 : vector<8x32xf32>
    %70 = arith.divf %68, %69 : vector<8x32xf32>
    %71 = arith.mulf %62, %8 : vector<8x32xf32>
    %72 = arith.mulf %56, %64 : vector<8x32xf32>
    %73 = arith.addf %71, %72 : vector<8x32xf32>
    %74 = math.tanh %73 : vector<8x32xf32>
    %75 = arith.mulf %70, %74 : vector<8x32xf32>
    %76 = arith.index_cast %44 : i32 to index
    %c0_26 = arith.constant 0 : index
    %c0_27 = arith.constant 0 : index
    %77 = vector.load %arg6[%76, %c0_26, %c0_27] : memref<8x8x32xf32, #tpu.memory_space<vmem>>, vector<1x8x32xf32>
    %78 = vector.shape_cast %77 : vector<1x8x32xf32> to vector<8x32xf32>
    %79 = vector.shape_cast %75 : vector<8x32xf32> to vector<1x8x32xf32>
    tpu.vector_store %arg6[%76, %c0_26, %c0_27], %79 {strides = array<i32>} : memref<8x8x32xf32, #tpu.memory_space<vmem>>, vector<1x8x32xf32>,
    %c1_i32 = arith.constant 1 : i32
    %80 = arith.index_cast %c1_i32 : i32 to index
    %c0_28 = arith.constant 0 : index
    %c0_29 = arith.constant 0 : index
    %81 = vector.load %arg1[%80, %c0_28, %c0_29] : memref<8x8x128xf32, #tpu.memory_space<vmem>>, vector<1x8x128xf32>
    %82 = vector.shape_cast %81 : vector<1x8x128xf32> to vector<8x128xf32>
    %83 = arith.truncf %39 : vector<8x32xf32> to vector<8x32xbf16>
    %cst_30 = arith.constant dense<0.000000e+00> : vector<8x128xf32>
    %84 = tpu.matmul %83, %3, %cst_30 {dimension_numbers = #tpu.dot_dimension_numbers<[1], [0], [0], [1], [0, 0, 1, 1], [], []>} : vector<8x32xbf16>, vector<32x128xbf16>, vector<8x128xf32> -> vector<8x128xf32>
    %85 = arith.addf %82, %84 : vector<8x128xf32>
    %86 = vector.extract_strided_slice %85 {offsets = [0, 0], sizes = [8, 32], strides = [1, 1]} : vector<8x128xf32> to vector<8x32xf32>
    %87 = arith.negf %86 : vector<8x32xf32>
    %88 = math.exp %87 : vector<8x32xf32>
    %cst_31 = arith.constant 1.000000e+00 : f32
    %89 = vector.broadcast %cst_31 : f32 to vector<8x32xf32>
    %90 = arith.addf %89, %88 : vector<8x32xf32>
    %91 = arith.divf %89, %90 : vector<8x32xf32>
    %92 = vector.extract_strided_slice %85 {offsets = [0, 32], sizes = [8, 32], strides = [1, 1]} : vector<8x128xf32> to vector<8x32xf32>
    %93 = arith.negf %92 : vector<8x32xf32>
    %94 = math.exp %93 : vector<8x32xf32>
    %cst_32 = arith.constant 1.000000e+00 : f32
    %95 = vector.broadcast %cst_32 : f32 to vector<8x32xf32>
    %96 = arith.addf %95, %94 : vector<8x32xf32>
    %97 = arith.divf %95, %96 : vector<8x32xf32>
    %98 = vector.extract_strided_slice %85 {offsets = [0, 64], sizes = [8, 32], strides = [1, 1]} : vector<8x128xf32> to vector<8x32xf32>
    %99 = math.tanh %98 : vector<8x32xf32>
    %100 = vector.extract_strided_slice %85 {offsets = [0, 96], sizes = [8, 32], strides = [1, 1]} : vector<8x128xf32> to vector<8x32xf32>
    %101 = arith.negf %100 : vector<8x32xf32>
    %102 = math.exp %101 : vector<8x32xf32>
    %cst_33 = arith.constant 1.000000e+00 : f32
    %103 = vector.broadcast %cst_33 : f32 to vector<8x32xf32>
    %104 = arith.addf %103, %102 : vector<8x32xf32>
    %105 = arith.divf %103, %104 : vector<8x32xf32>
    %106 = arith.mulf %97, %37 : vector<8x32xf32>
    %107 = arith.mulf %91, %99 : vector<8x32xf32>
    %108 = arith.addf %106, %107 : vector<8x32xf32>
    %109 = math.tanh %108 : vector<8x32xf32>
    %110 = arith.mulf %105, %109 : vector<8x32xf32>
    %111 = arith.index_cast %c1_i32 : i32 to index
    %c0_34 = arith.constant 0 : index
    %c0_35 = arith.constant 0 : index
    %112 = vector.load %arg5[%111, %c0_34, %c0_35] : memref<8x8x32xf32, #tpu.memory_space<vmem>>, vector<1x8x32xf32>
    %113 = vector.shape_cast %112 : vector<1x8x32xf32> to vector<8x32xf32>
    %114 = vector.shape_cast %110 : vector<8x32xf32> to vector<1x8x32xf32>
    tpu.vector_store %arg5[%111, %c0_34, %c0_35], %114 {strides = array<i32>} : memref<8x8x32xf32, #tpu.memory_space<vmem>>, vector<1x8x32xf32>,
    %c7_i32_36 = arith.constant 7 : i32
    %115 = arith.subi %c7_i32_36, %c1_i32 : i32
    %116 = arith.index_cast %115 : i32 to index
    %c0_37 = arith.constant 0 : index
    %c0_38 = arith.constant 0 : index
    %117 = vector.load %arg2[%116, %c0_37, %c0_38] : memref<8x8x128xf32, #tpu.memory_space<vmem>>, vector<1x8x128xf32>
    %118 = vector.shape_cast %117 : vector<1x8x128xf32> to vector<8x128xf32>
    %119 = arith.truncf %75 : vector<8x32xf32> to vector<8x32xbf16>
    %cst_39 = arith.constant dense<0.000000e+00> : vector<8x128xf32>
    %120 = tpu.matmul %119, %4, %cst_39 {dimension_numbers = #tpu.dot_dimension_numbers<[1], [0], [0], [1], [0, 0, 1, 1], [], []>} : vector<8x32xbf16>, vector<32x128xbf16>, vector<8x128xf32> -> vector<8x128xf32>
    %121 = arith.addf %118, %120 : vector<8x128xf32>
    %122 = vector.extract_strided_slice %121 {offsets = [0, 0], sizes = [8, 32], strides = [1, 1]} : vector<8x128xf32> to vector<8x32xf32>
    %123 = arith.negf %122 : vector<8x32xf32>
    %124 = math.exp %123 : vector<8x32xf32>
    %cst_40 = arith.constant 1.000000e+00 : f32
    %125 = vector.broadcast %cst_40 : f32 to vector<8x32xf32>
    %126 = arith.addf %125, %124 : vector<8x32xf32>
    %127 = arith.divf %125, %126 : vector<8x32xf32>
    %128 = vector.extract_strided_slice %121 {offsets = [0, 32], sizes = [8, 32], strides = [1, 1]} : vector<8x128xf32> to vector<8x32xf32>
    %129 = arith.negf %128 : vector<8x32xf32>
    %130 = math.exp %129 : vector<8x32xf32>
    %cst_41 = arith.constant 1.000000e+00 : f32
    %131 = vector.broadcast %cst_41 : f32 to vector<8x32xf32>
    %132 = arith.addf %131, %130 : vector<8x32xf32>
    %133 = arith.divf %131, %132 : vector<8x32xf32>
    %134 = vector.extract_strided_slice %121 {offsets = [0, 64], sizes = [8, 32], strides = [1, 1]} : vector<8x128xf32> to vector<8x32xf32>
    %135 = math.tanh %134 : vector<8x32xf32>
    %136 = vector.extract_strided_slice %121 {offsets = [0, 96], sizes = [8, 32], strides = [1, 1]} : vector<8x128xf32> to vector<8x32xf32>
    %137 = arith.negf %136 : vector<8x32xf32>
    %138 = math.exp %137 : vector<8x32xf32>
    %cst_42 = arith.constant 1.000000e+00 : f32
    %139 = vector.broadcast %cst_42 : f32 to vector<8x32xf32>
    %140 = arith.addf %139, %138 : vector<8x32xf32>
    %141 = arith.divf %139, %140 : vector<8x32xf32>
    %142 = arith.mulf %133, %73 : vector<8x32xf32>
    %143 = arith.mulf %127, %135 : vector<8x32xf32>
    %144 = arith.addf %142, %143 : vector<8x32xf32>
    %145 = math.tanh %144 : vector<8x32xf32>
    %146 = arith.mulf %141, %145 : vector<8x32xf32>
    %147 = arith.index_cast %115 : i32 to index
    %c0_43 = arith.constant 0 : index
    %c0_44 = arith.constant 0 : index
    %148 = vector.load %arg6[%147, %c0_43, %c0_44] : memref<8x8x32xf32, #tpu.memory_space<vmem>>, vector<1x8x32xf32>
    %149 = vector.shape_cast %148 : vector<1x8x32xf32> to vector<8x32xf32>
    %150 = vector.shape_cast %146 : vector<8x32xf32> to vector<1x8x32xf32>
    tpu.vector_store %arg6[%147, %c0_43, %c0_44], %150 {strides = array<i32>} : memref<8x8x32xf32, #tpu.memory_space<vmem>>, vector<1x8x32xf32>,
    %c2_i32 = arith.constant 2 : i32
    %151 = arith.index_cast %c2_i32 : i32 to index
    %c0_45 = arith.constant 0 : index
    %c0_46 = arith.constant 0 : index
    %152 = vector.load %arg1[%151, %c0_45, %c0_46] : memref<8x8x128xf32, #tpu.memory_space<vmem>>, vector<1x8x128xf32>
    %153 = vector.shape_cast %152 : vector<1x8x128xf32> to vector<8x128xf32>
    %154 = arith.truncf %110 : vector<8x32xf32> to vector<8x32xbf16>
    %cst_47 = arith.constant dense<0.000000e+00> : vector<8x128xf32>
    %155 = tpu.matmul %154, %3, %cst_47 {dimension_numbers = #tpu.dot_dimension_numbers<[1], [0], [0], [1], [0, 0, 1, 1], [], []>} : vector<8x32xbf16>, vector<32x128xbf16>, vector<8x128xf32> -> vector<8x128xf32>
    %156 = arith.addf %153, %155 : vector<8x128xf32>
    %157 = vector.extract_strided_slice %156 {offsets = [0, 0], sizes = [8, 32], strides = [1, 1]} : vector<8x128xf32> to vector<8x32xf32>
    %158 = arith.negf %157 : vector<8x32xf32>
    %159 = math.exp %158 : vector<8x32xf32>
    %cst_48 = arith.constant 1.000000e+00 : f32
    %160 = vector.broadcast %cst_48 : f32 to vector<8x32xf32>
    %161 = arith.addf %160, %159 : vector<8x32xf32>
    %162 = arith.divf %160, %161 : vector<8x32xf32>
    %163 = vector.extract_strided_slice %156 {offsets = [0, 32], sizes = [8, 32], strides = [1, 1]} : vector<8x128xf32> to vector<8x32xf32>
    %164 = arith.negf %163 : vector<8x32xf32>
    %165 = math.exp %164 : vector<8x32xf32>
    %cst_49 = arith.constant 1.000000e+00 : f32
    %166 = vector.broadcast %cst_49 : f32 to vector<8x32xf32>
    %167 = arith.addf %166, %165 : vector<8x32xf32>
    %168 = arith.divf %166, %167 : vector<8x32xf32>
    %169 = vector.extract_strided_slice %156 {offsets = [0, 64], sizes = [8, 32], strides = [1, 1]} : vector<8x128xf32> to vector<8x32xf32>
    %170 = math.tanh %169 : vector<8x32xf32>
    %171 = vector.extract_strided_slice %156 {offsets = [0, 96], sizes = [8, 32], strides = [1, 1]} : vector<8x128xf32> to vector<8x32xf32>
    %172 = arith.negf %171 : vector<8x32xf32>
    %173 = math.exp %172 : vector<8x32xf32>
    %cst_50 = arith.constant 1.000000e+00 : f32
    %174 = vector.broadcast %cst_50 : f32 to vector<8x32xf32>
    %175 = arith.addf %174, %173 : vector<8x32xf32>
    %176 = arith.divf %174, %175 : vector<8x32xf32>
    %177 = arith.mulf %168, %108 : vector<8x32xf32>
    %178 = arith.mulf %162, %170 : vector<8x32xf32>
    %179 = arith.addf %177, %178 : vector<8x32xf32>
    %180 = math.tanh %179 : vector<8x32xf32>
    %181 = arith.mulf %176, %180 : vector<8x32xf32>
    %182 = arith.index_cast %c2_i32 : i32 to index
    %c0_51 = arith.constant 0 : index
    %c0_52 = arith.constant 0 : index
    %183 = vector.load %arg5[%182, %c0_51, %c0_52] : memref<8x8x32xf32, #tpu.memory_space<vmem>>, vector<1x8x32xf32>
    %184 = vector.shape_cast %183 : vector<1x8x32xf32> to vector<8x32xf32>
    %185 = vector.shape_cast %181 : vector<8x32xf32> to vector<1x8x32xf32>
    tpu.vector_store %arg5[%182, %c0_51, %c0_52], %185 {strides = array<i32>} : memref<8x8x32xf32, #tpu.memory_space<vmem>>, vector<1x8x32xf32>,
    %c7_i32_53 = arith.constant 7 : i32
    %186 = arith.subi %c7_i32_53, %c2_i32 : i32
    %187 = arith.index_cast %186 : i32 to index
    %c0_54 = arith.constant 0 : index
    %c0_55 = arith.constant 0 : index
    %188 = vector.load %arg2[%187, %c0_54, %c0_55] : memref<8x8x128xf32, #tpu.memory_space<vmem>>, vector<1x8x128xf32>
    %189 = vector.shape_cast %188 : vector<1x8x128xf32> to vector<8x128xf32>
    %190 = arith.truncf %146 : vector<8x32xf32> to vector<8x32xbf16>
    %cst_56 = arith.constant dense<0.000000e+00> : vector<8x128xf32>
    %191 = tpu.matmul %190, %4, %cst_56 {dimension_numbers = #tpu.dot_dimension_numbers<[1], [0], [0], [1], [0, 0, 1, 1], [], []>} : vector<8x32xbf16>, vector<32x128xbf16>, vector<8x128xf32> -> vector<8x128xf32>
    %192 = arith.addf %189, %191 : vector<8x128xf32>
    %193 = vector.extract_strided_slice %192 {offsets = [0, 0], sizes = [8, 32], strides = [1, 1]} : vector<8x128xf32> to vector<8x32xf32>
    %194 = arith.negf %193 : vector<8x32xf32>
    %195 = math.exp %194 : vector<8x32xf32>
    %cst_57 = arith.constant 1.000000e+00 : f32
    %196 = vector.broadcast %cst_57 : f32 to vector<8x32xf32>
    %197 = arith.addf %196, %195 : vector<8x32xf32>
    %198 = arith.divf %196, %197 : vector<8x32xf32>
    %199 = vector.extract_strided_slice %192 {offsets = [0, 32], sizes = [8, 32], strides = [1, 1]} : vector<8x128xf32> to vector<8x32xf32>
    %200 = arith.negf %199 : vector<8x32xf32>
    %201 = math.exp %200 : vector<8x32xf32>
    %cst_58 = arith.constant 1.000000e+00 : f32
    %202 = vector.broadcast %cst_58 : f32 to vector<8x32xf32>
    %203 = arith.addf %202, %201 : vector<8x32xf32>
    %204 = arith.divf %202, %203 : vector<8x32xf32>
    %205 = vector.extract_strided_slice %192 {offsets = [0, 64], sizes = [8, 32], strides = [1, 1]} : vector<8x128xf32> to vector<8x32xf32>
    %206 = math.tanh %205 : vector<8x32xf32>
    %207 = vector.extract_strided_slice %192 {offsets = [0, 96], sizes = [8, 32], strides = [1, 1]} : vector<8x128xf32> to vector<8x32xf32>
    %208 = arith.negf %207 : vector<8x32xf32>
    %209 = math.exp %208 : vector<8x32xf32>
    %cst_59 = arith.constant 1.000000e+00 : f32
    %210 = vector.broadcast %cst_59 : f32 to vector<8x32xf32>
    %211 = arith.addf %210, %209 : vector<8x32xf32>
    %212 = arith.divf %210, %211 : vector<8x32xf32>
    %213 = arith.mulf %204, %144 : vector<8x32xf32>
    %214 = arith.mulf %198, %206 : vector<8x32xf32>
    %215 = arith.addf %213, %214 : vector<8x32xf32>
    %216 = math.tanh %215 : vector<8x32xf32>
    %217 = arith.mulf %212, %216 : vector<8x32xf32>
    %218 = arith.index_cast %186 : i32 to index
    %c0_60 = arith.constant 0 : index
    %c0_61 = arith.constant 0 : index
    %219 = vector.load %arg6[%218, %c0_60, %c0_61] : memref<8x8x32xf32, #tpu.memory_space<vmem>>, vector<1x8x32xf32>
    %220 = vector.shape_cast %219 : vector<1x8x32xf32> to vector<8x32xf32>
    %221 = vector.shape_cast %217 : vector<8x32xf32> to vector<1x8x32xf32>
    tpu.vector_store %arg6[%218, %c0_60, %c0_61], %221 {strides = array<i32>} : memref<8x8x32xf32, #tpu.memory_space<vmem>>, vector<1x8x32xf32>,
    %c3_i32 = arith.constant 3 : i32
    %222 = arith.index_cast %c3_i32 : i32 to index
    %c0_62 = arith.constant 0 : index
    %c0_63 = arith.constant 0 : index
    %223 = vector.load %arg1[%222, %c0_62, %c0_63] : memref<8x8x128xf32, #tpu.memory_space<vmem>>, vector<1x8x128xf32>
    %224 = vector.shape_cast %223 : vector<1x8x128xf32> to vector<8x128xf32>
    %225 = arith.truncf %181 : vector<8x32xf32> to vector<8x32xbf16>
    %cst_64 = arith.constant dense<0.000000e+00> : vector<8x128xf32>
    %226 = tpu.matmul %225, %3, %cst_64 {dimension_numbers = #tpu.dot_dimension_numbers<[1], [0], [0], [1], [0, 0, 1, 1], [], []>} : vector<8x32xbf16>, vector<32x128xbf16>, vector<8x128xf32> -> vector<8x128xf32>
    %227 = arith.addf %224, %226 : vector<8x128xf32>
    %228 = vector.extract_strided_slice %227 {offsets = [0, 0], sizes = [8, 32], strides = [1, 1]} : vector<8x128xf32> to vector<8x32xf32>
    %229 = arith.negf %228 : vector<8x32xf32>
    %230 = math.exp %229 : vector<8x32xf32>
    %cst_65 = arith.constant 1.000000e+00 : f32
    %231 = vector.broadcast %cst_65 : f32 to vector<8x32xf32>
    %232 = arith.addf %231, %230 : vector<8x32xf32>
    %233 = arith.divf %231, %232 : vector<8x32xf32>
    %234 = vector.extract_strided_slice %227 {offsets = [0, 32], sizes = [8, 32], strides = [1, 1]} : vector<8x128xf32> to vector<8x32xf32>
    %235 = arith.negf %234 : vector<8x32xf32>
    %236 = math.exp %235 : vector<8x32xf32>
    %cst_66 = arith.constant 1.000000e+00 : f32
    %237 = vector.broadcast %cst_66 : f32 to vector<8x32xf32>
    %238 = arith.addf %237, %236 : vector<8x32xf32>
    %239 = arith.divf %237, %238 : vector<8x32xf32>
    %240 = vector.extract_strided_slice %227 {offsets = [0, 64], sizes = [8, 32], strides = [1, 1]} : vector<8x128xf32> to vector<8x32xf32>
    %241 = math.tanh %240 : vector<8x32xf32>
    %242 = vector.extract_strided_slice %227 {offsets = [0, 96], sizes = [8, 32], strides = [1, 1]} : vector<8x128xf32> to vector<8x32xf32>
    %243 = arith.negf %242 : vector<8x32xf32>
    %244 = math.exp %243 : vector<8x32xf32>
    %cst_67 = arith.constant 1.000000e+00 : f32
    %245 = vector.broadcast %cst_67 : f32 to vector<8x32xf32>
    %246 = arith.addf %245, %244 : vector<8x32xf32>
    %247 = arith.divf %245, %246 : vector<8x32xf32>
    %248 = arith.mulf %239, %179 : vector<8x32xf32>
    %249 = arith.mulf %233, %241 : vector<8x32xf32>
    %250 = arith.addf %248, %249 : vector<8x32xf32>
    %251 = math.tanh %250 : vector<8x32xf32>
    %252 = arith.mulf %247, %251 : vector<8x32xf32>
    %253 = arith.index_cast %c3_i32 : i32 to index
    %c0_68 = arith.constant 0 : index
    %c0_69 = arith.constant 0 : index
    %254 = vector.load %arg5[%253, %c0_68, %c0_69] : memref<8x8x32xf32, #tpu.memory_space<vmem>>, vector<1x8x32xf32>
    %255 = vector.shape_cast %254 : vector<1x8x32xf32> to vector<8x32xf32>
    %256 = vector.shape_cast %252 : vector<8x32xf32> to vector<1x8x32xf32>
    tpu.vector_store %arg5[%253, %c0_68, %c0_69], %256 {strides = array<i32>} : memref<8x8x32xf32, #tpu.memory_space<vmem>>, vector<1x8x32xf32>,
    %c7_i32_70 = arith.constant 7 : i32
    %257 = arith.subi %c7_i32_70, %c3_i32 : i32
    %258 = arith.index_cast %257 : i32 to index
    %c0_71 = arith.constant 0 : index
    %c0_72 = arith.constant 0 : index
    %259 = vector.load %arg2[%258, %c0_71, %c0_72] : memref<8x8x128xf32, #tpu.memory_space<vmem>>, vector<1x8x128xf32>
    %260 = vector.shape_cast %259 : vector<1x8x128xf32> to vector<8x128xf32>
    %261 = arith.truncf %217 : vector<8x32xf32> to vector<8x32xbf16>
    %cst_73 = arith.constant dense<0.000000e+00> : vector<8x128xf32>
    %262 = tpu.matmul %261, %4, %cst_73 {dimension_numbers = #tpu.dot_dimension_numbers<[1], [0], [0], [1], [0, 0, 1, 1], [], []>} : vector<8x32xbf16>, vector<32x128xbf16>, vector<8x128xf32> -> vector<8x128xf32>
    %263 = arith.addf %260, %262 : vector<8x128xf32>
    %264 = vector.extract_strided_slice %263 {offsets = [0, 0], sizes = [8, 32], strides = [1, 1]} : vector<8x128xf32> to vector<8x32xf32>
    %265 = arith.negf %264 : vector<8x32xf32>
    %266 = math.exp %265 : vector<8x32xf32>
    %cst_74 = arith.constant 1.000000e+00 : f32
    %267 = vector.broadcast %cst_74 : f32 to vector<8x32xf32>
    %268 = arith.addf %267, %266 : vector<8x32xf32>
    %269 = arith.divf %267, %268 : vector<8x32xf32>
    %270 = vector.extract_strided_slice %263 {offsets = [0, 32], sizes = [8, 32], strides = [1, 1]} : vector<8x128xf32> to vector<8x32xf32>
    %271 = arith.negf %270 : vector<8x32xf32>
    %272 = math.exp %271 : vector<8x32xf32>
    %cst_75 = arith.constant 1.000000e+00 : f32
    %273 = vector.broadcast %cst_75 : f32 to vector<8x32xf32>
    %274 = arith.addf %273, %272 : vector<8x32xf32>
    %275 = arith.divf %273, %274 : vector<8x32xf32>
    %276 = vector.extract_strided_slice %263 {offsets = [0, 64], sizes = [8, 32], strides = [1, 1]} : vector<8x128xf32> to vector<8x32xf32>
    %277 = math.tanh %276 : vector<8x32xf32>
    %278 = vector.extract_strided_slice %263 {offsets = [0, 96], sizes = [8, 32], strides = [1, 1]} : vector<8x128xf32> to vector<8x32xf32>
    %279 = arith.negf %278 : vector<8x32xf32>
    %280 = math.exp %279 : vector<8x32xf32>
    %cst_76 = arith.constant 1.000000e+00 : f32
    %281 = vector.broadcast %cst_76 : f32 to vector<8x32xf32>
    %282 = arith.addf %281, %280 : vector<8x32xf32>
    %283 = arith.divf %281, %282 : vector<8x32xf32>
    %284 = arith.mulf %275, %215 : vector<8x32xf32>
    %285 = arith.mulf %269, %277 : vector<8x32xf32>
    %286 = arith.addf %284, %285 : vector<8x32xf32>
    %287 = math.tanh %286 : vector<8x32xf32>
    %288 = arith.mulf %283, %287 : vector<8x32xf32>
    %289 = arith.index_cast %257 : i32 to index
    %c0_77 = arith.constant 0 : index
    %c0_78 = arith.constant 0 : index
    %290 = vector.load %arg6[%289, %c0_77, %c0_78] : memref<8x8x32xf32, #tpu.memory_space<vmem>>, vector<1x8x32xf32>
    %291 = vector.shape_cast %290 : vector<1x8x32xf32> to vector<8x32xf32>
    %292 = vector.shape_cast %288 : vector<8x32xf32> to vector<1x8x32xf32>
    tpu.vector_store %arg6[%289, %c0_77, %c0_78], %292 {strides = array<i32>} : memref<8x8x32xf32, #tpu.memory_space<vmem>>, vector<1x8x32xf32>,
    %c4_i32 = arith.constant 4 : i32
    %293 = arith.index_cast %c4_i32 : i32 to index
    %c0_79 = arith.constant 0 : index
    %c0_80 = arith.constant 0 : index
    %294 = vector.load %arg1[%293, %c0_79, %c0_80] : memref<8x8x128xf32, #tpu.memory_space<vmem>>, vector<1x8x128xf32>
    %295 = vector.shape_cast %294 : vector<1x8x128xf32> to vector<8x128xf32>
    %296 = arith.truncf %252 : vector<8x32xf32> to vector<8x32xbf16>
    %cst_81 = arith.constant dense<0.000000e+00> : vector<8x128xf32>
    %297 = tpu.matmul %296, %3, %cst_81 {dimension_numbers = #tpu.dot_dimension_numbers<[1], [0], [0], [1], [0, 0, 1, 1], [], []>} : vector<8x32xbf16>, vector<32x128xbf16>, vector<8x128xf32> -> vector<8x128xf32>
    %298 = arith.addf %295, %297 : vector<8x128xf32>
    %299 = vector.extract_strided_slice %298 {offsets = [0, 0], sizes = [8, 32], strides = [1, 1]} : vector<8x128xf32> to vector<8x32xf32>
    %300 = arith.negf %299 : vector<8x32xf32>
    %301 = math.exp %300 : vector<8x32xf32>
    %cst_82 = arith.constant 1.000000e+00 : f32
    %302 = vector.broadcast %cst_82 : f32 to vector<8x32xf32>
    %303 = arith.addf %302, %301 : vector<8x32xf32>
    %304 = arith.divf %302, %303 : vector<8x32xf32>
    %305 = vector.extract_strided_slice %298 {offsets = [0, 32], sizes = [8, 32], strides = [1, 1]} : vector<8x128xf32> to vector<8x32xf32>
    %306 = arith.negf %305 : vector<8x32xf32>
    %307 = math.exp %306 : vector<8x32xf32>
    %cst_83 = arith.constant 1.000000e+00 : f32
    %308 = vector.broadcast %cst_83 : f32 to vector<8x32xf32>
    %309 = arith.addf %308, %307 : vector<8x32xf32>
    %310 = arith.divf %308, %309 : vector<8x32xf32>
    %311 = vector.extract_strided_slice %298 {offsets = [0, 64], sizes = [8, 32], strides = [1, 1]} : vector<8x128xf32> to vector<8x32xf32>
    %312 = math.tanh %311 : vector<8x32xf32>
    %313 = vector.extract_strided_slice %298 {offsets = [0, 96], sizes = [8, 32], strides = [1, 1]} : vector<8x128xf32> to vector<8x32xf32>
    %314 = arith.negf %313 : vector<8x32xf32>
    %315 = math.exp %314 : vector<8x32xf32>
    %cst_84 = arith.constant 1.000000e+00 : f32
    %316 = vector.broadcast %cst_84 : f32 to vector<8x32xf32>
    %317 = arith.addf %316, %315 : vector<8x32xf32>
    %318 = arith.divf %316, %317 : vector<8x32xf32>
    %319 = arith.mulf %310, %250 : vector<8x32xf32>
    %320 = arith.mulf %304, %312 : vector<8x32xf32>
    %321 = arith.addf %319, %320 : vector<8x32xf32>
    %322 = math.tanh %321 : vector<8x32xf32>
    %323 = arith.mulf %318, %322 : vector<8x32xf32>
    %324 = arith.index_cast %c4_i32 : i32 to index
    %c0_85 = arith.constant 0 : index
    %c0_86 = arith.constant 0 : index
    %325 = vector.load %arg5[%324, %c0_85, %c0_86] : memref<8x8x32xf32, #tpu.memory_space<vmem>>, vector<1x8x32xf32>
    %326 = vector.shape_cast %325 : vector<1x8x32xf32> to vector<8x32xf32>
    %327 = vector.shape_cast %323 : vector<8x32xf32> to vector<1x8x32xf32>
    tpu.vector_store %arg5[%324, %c0_85, %c0_86], %327 {strides = array<i32>} : memref<8x8x32xf32, #tpu.memory_space<vmem>>, vector<1x8x32xf32>,
    %c7_i32_87 = arith.constant 7 : i32
    %328 = arith.subi %c7_i32_87, %c4_i32 : i32
    %329 = arith.index_cast %328 : i32 to index
    %c0_88 = arith.constant 0 : index
    %c0_89 = arith.constant 0 : index
    %330 = vector.load %arg2[%329, %c0_88, %c0_89] : memref<8x8x128xf32, #tpu.memory_space<vmem>>, vector<1x8x128xf32>
    %331 = vector.shape_cast %330 : vector<1x8x128xf32> to vector<8x128xf32>
    %332 = arith.truncf %288 : vector<8x32xf32> to vector<8x32xbf16>
    %cst_90 = arith.constant dense<0.000000e+00> : vector<8x128xf32>
    %333 = tpu.matmul %332, %4, %cst_90 {dimension_numbers = #tpu.dot_dimension_numbers<[1], [0], [0], [1], [0, 0, 1, 1], [], []>} : vector<8x32xbf16>, vector<32x128xbf16>, vector<8x128xf32> -> vector<8x128xf32>
    %334 = arith.addf %331, %333 : vector<8x128xf32>
    %335 = vector.extract_strided_slice %334 {offsets = [0, 0], sizes = [8, 32], strides = [1, 1]} : vector<8x128xf32> to vector<8x32xf32>
    %336 = arith.negf %335 : vector<8x32xf32>
    %337 = math.exp %336 : vector<8x32xf32>
    %cst_91 = arith.constant 1.000000e+00 : f32
    %338 = vector.broadcast %cst_91 : f32 to vector<8x32xf32>
    %339 = arith.addf %338, %337 : vector<8x32xf32>
    %340 = arith.divf %338, %339 : vector<8x32xf32>
    %341 = vector.extract_strided_slice %334 {offsets = [0, 32], sizes = [8, 32], strides = [1, 1]} : vector<8x128xf32> to vector<8x32xf32>
    %342 = arith.negf %341 : vector<8x32xf32>
    %343 = math.exp %342 : vector<8x32xf32>
    %cst_92 = arith.constant 1.000000e+00 : f32
    %344 = vector.broadcast %cst_92 : f32 to vector<8x32xf32>
    %345 = arith.addf %344, %343 : vector<8x32xf32>
    %346 = arith.divf %344, %345 : vector<8x32xf32>
    %347 = vector.extract_strided_slice %334 {offsets = [0, 64], sizes = [8, 32], strides = [1, 1]} : vector<8x128xf32> to vector<8x32xf32>
    %348 = math.tanh %347 : vector<8x32xf32>
    %349 = vector.extract_strided_slice %334 {offsets = [0, 96], sizes = [8, 32], strides = [1, 1]} : vector<8x128xf32> to vector<8x32xf32>
    %350 = arith.negf %349 : vector<8x32xf32>
    %351 = math.exp %350 : vector<8x32xf32>
    %cst_93 = arith.constant 1.000000e+00 : f32
    %352 = vector.broadcast %cst_93 : f32 to vector<8x32xf32>
    %353 = arith.addf %352, %351 : vector<8x32xf32>
    %354 = arith.divf %352, %353 : vector<8x32xf32>
    %355 = arith.mulf %346, %286 : vector<8x32xf32>
    %356 = arith.mulf %340, %348 : vector<8x32xf32>
    %357 = arith.addf %355, %356 : vector<8x32xf32>
    %358 = math.tanh %357 : vector<8x32xf32>
    %359 = arith.mulf %354, %358 : vector<8x32xf32>
    %360 = arith.index_cast %328 : i32 to index
    %c0_94 = arith.constant 0 : index
    %c0_95 = arith.constant 0 : index
    %361 = vector.load %arg6[%360, %c0_94, %c0_95] : memref<8x8x32xf32, #tpu.memory_space<vmem>>, vector<1x8x32xf32>
    %362 = vector.shape_cast %361 : vector<1x8x32xf32> to vector<8x32xf32>
    %363 = vector.shape_cast %359 : vector<8x32xf32> to vector<1x8x32xf32>
    tpu.vector_store %arg6[%360, %c0_94, %c0_95], %363 {strides = array<i32>} : memref<8x8x32xf32, #tpu.memory_space<vmem>>, vector<1x8x32xf32>,
    %c5_i32 = arith.constant 5 : i32
    %364 = arith.index_cast %c5_i32 : i32 to index
    %c0_96 = arith.constant 0 : index
    %c0_97 = arith.constant 0 : index
    %365 = vector.load %arg1[%364, %c0_96, %c0_97] : memref<8x8x128xf32, #tpu.memory_space<vmem>>, vector<1x8x128xf32>
    %366 = vector.shape_cast %365 : vector<1x8x128xf32> to vector<8x128xf32>
    %367 = arith.truncf %323 : vector<8x32xf32> to vector<8x32xbf16>
    %cst_98 = arith.constant dense<0.000000e+00> : vector<8x128xf32>
    %368 = tpu.matmul %367, %3, %cst_98 {dimension_numbers = #tpu.dot_dimension_numbers<[1], [0], [0], [1], [0, 0, 1, 1], [], []>} : vector<8x32xbf16>, vector<32x128xbf16>, vector<8x128xf32> -> vector<8x128xf32>
    %369 = arith.addf %366, %368 : vector<8x128xf32>
    %370 = vector.extract_strided_slice %369 {offsets = [0, 0], sizes = [8, 32], strides = [1, 1]} : vector<8x128xf32> to vector<8x32xf32>
    %371 = arith.negf %370 : vector<8x32xf32>
    %372 = math.exp %371 : vector<8x32xf32>
    %cst_99 = arith.constant 1.000000e+00 : f32
    %373 = vector.broadcast %cst_99 : f32 to vector<8x32xf32>
    %374 = arith.addf %373, %372 : vector<8x32xf32>
    %375 = arith.divf %373, %374 : vector<8x32xf32>
    %376 = vector.extract_strided_slice %369 {offsets = [0, 32], sizes = [8, 32], strides = [1, 1]} : vector<8x128xf32> to vector<8x32xf32>
    %377 = arith.negf %376 : vector<8x32xf32>
    %378 = math.exp %377 : vector<8x32xf32>
    %cst_100 = arith.constant 1.000000e+00 : f32
    %379 = vector.broadcast %cst_100 : f32 to vector<8x32xf32>
    %380 = arith.addf %379, %378 : vector<8x32xf32>
    %381 = arith.divf %379, %380 : vector<8x32xf32>
    %382 = vector.extract_strided_slice %369 {offsets = [0, 64], sizes = [8, 32], strides = [1, 1]} : vector<8x128xf32> to vector<8x32xf32>
    %383 = math.tanh %382 : vector<8x32xf32>
    %384 = vector.extract_strided_slice %369 {offsets = [0, 96], sizes = [8, 32], strides = [1, 1]} : vector<8x128xf32> to vector<8x32xf32>
    %385 = arith.negf %384 : vector<8x32xf32>
    %386 = math.exp %385 : vector<8x32xf32>
    %cst_101 = arith.constant 1.000000e+00 : f32
    %387 = vector.broadcast %cst_101 : f32 to vector<8x32xf32>
    %388 = arith.addf %387, %386 : vector<8x32xf32>
    %389 = arith.divf %387, %388 : vector<8x32xf32>
    %390 = arith.mulf %381, %321 : vector<8x32xf32>
    %391 = arith.mulf %375, %383 : vector<8x32xf32>
    %392 = arith.addf %390, %391 : vector<8x32xf32>
    %393 = math.tanh %392 : vector<8x32xf32>
    %394 = arith.mulf %389, %393 : vector<8x32xf32>
    %395 = arith.index_cast %c5_i32 : i32 to index
    %c0_102 = arith.constant 0 : index
    %c0_103 = arith.constant 0 : index
    %396 = vector.load %arg5[%395, %c0_102, %c0_103] : memref<8x8x32xf32, #tpu.memory_space<vmem>>, vector<1x8x32xf32>
    %397 = vector.shape_cast %396 : vector<1x8x32xf32> to vector<8x32xf32>
    %398 = vector.shape_cast %394 : vector<8x32xf32> to vector<1x8x32xf32>
    tpu.vector_store %arg5[%395, %c0_102, %c0_103], %398 {strides = array<i32>} : memref<8x8x32xf32, #tpu.memory_space<vmem>>, vector<1x8x32xf32>,
    %c7_i32_104 = arith.constant 7 : i32
    %399 = arith.subi %c7_i32_104, %c5_i32 : i32
    %400 = arith.index_cast %399 : i32 to index
    %c0_105 = arith.constant 0 : index
    %c0_106 = arith.constant 0 : index
    %401 = vector.load %arg2[%400, %c0_105, %c0_106] : memref<8x8x128xf32, #tpu.memory_space<vmem>>, vector<1x8x128xf32>
    %402 = vector.shape_cast %401 : vector<1x8x128xf32> to vector<8x128xf32>
    %403 = arith.truncf %359 : vector<8x32xf32> to vector<8x32xbf16>
    %cst_107 = arith.constant dense<0.000000e+00> : vector<8x128xf32>
    %404 = tpu.matmul %403, %4, %cst_107 {dimension_numbers = #tpu.dot_dimension_numbers<[1], [0], [0], [1], [0, 0, 1, 1], [], []>} : vector<8x32xbf16>, vector<32x128xbf16>, vector<8x128xf32> -> vector<8x128xf32>
    %405 = arith.addf %402, %404 : vector<8x128xf32>
    %406 = vector.extract_strided_slice %405 {offsets = [0, 0], sizes = [8, 32], strides = [1, 1]} : vector<8x128xf32> to vector<8x32xf32>
    %407 = arith.negf %406 : vector<8x32xf32>
    %408 = math.exp %407 : vector<8x32xf32>
    %cst_108 = arith.constant 1.000000e+00 : f32
    %409 = vector.broadcast %cst_108 : f32 to vector<8x32xf32>
    %410 = arith.addf %409, %408 : vector<8x32xf32>
    %411 = arith.divf %409, %410 : vector<8x32xf32>
    %412 = vector.extract_strided_slice %405 {offsets = [0, 32], sizes = [8, 32], strides = [1, 1]} : vector<8x128xf32> to vector<8x32xf32>
    %413 = arith.negf %412 : vector<8x32xf32>
    %414 = math.exp %413 : vector<8x32xf32>
    %cst_109 = arith.constant 1.000000e+00 : f32
    %415 = vector.broadcast %cst_109 : f32 to vector<8x32xf32>
    %416 = arith.addf %415, %414 : vector<8x32xf32>
    %417 = arith.divf %415, %416 : vector<8x32xf32>
    %418 = vector.extract_strided_slice %405 {offsets = [0, 64], sizes = [8, 32], strides = [1, 1]} : vector<8x128xf32> to vector<8x32xf32>
    %419 = math.tanh %418 : vector<8x32xf32>
    %420 = vector.extract_strided_slice %405 {offsets = [0, 96], sizes = [8, 32], strides = [1, 1]} : vector<8x128xf32> to vector<8x32xf32>
    %421 = arith.negf %420 : vector<8x32xf32>
    %422 = math.exp %421 : vector<8x32xf32>
    %cst_110 = arith.constant 1.000000e+00 : f32
    %423 = vector.broadcast %cst_110 : f32 to vector<8x32xf32>
    %424 = arith.addf %423, %422 : vector<8x32xf32>
    %425 = arith.divf %423, %424 : vector<8x32xf32>
    %426 = arith.mulf %417, %357 : vector<8x32xf32>
    %427 = arith.mulf %411, %419 : vector<8x32xf32>
    %428 = arith.addf %426, %427 : vector<8x32xf32>
    %429 = math.tanh %428 : vector<8x32xf32>
    %430 = arith.mulf %425, %429 : vector<8x32xf32>
    %431 = arith.index_cast %399 : i32 to index
    %c0_111 = arith.constant 0 : index
    %c0_112 = arith.constant 0 : index
    %432 = vector.load %arg6[%431, %c0_111, %c0_112] : memref<8x8x32xf32, #tpu.memory_space<vmem>>, vector<1x8x32xf32>
    %433 = vector.shape_cast %432 : vector<1x8x32xf32> to vector<8x32xf32>
    %434 = vector.shape_cast %430 : vector<8x32xf32> to vector<1x8x32xf32>
    tpu.vector_store %arg6[%431, %c0_111, %c0_112], %434 {strides = array<i32>} : memref<8x8x32xf32, #tpu.memory_space<vmem>>, vector<1x8x32xf32>,
    %c6_i32 = arith.constant 6 : i32
    %435 = arith.index_cast %c6_i32 : i32 to index
    %c0_113 = arith.constant 0 : index
    %c0_114 = arith.constant 0 : index
    %436 = vector.load %arg1[%435, %c0_113, %c0_114] : memref<8x8x128xf32, #tpu.memory_space<vmem>>, vector<1x8x128xf32>
    %437 = vector.shape_cast %436 : vector<1x8x128xf32> to vector<8x128xf32>
    %438 = arith.truncf %394 : vector<8x32xf32> to vector<8x32xbf16>
    %cst_115 = arith.constant dense<0.000000e+00> : vector<8x128xf32>
    %439 = tpu.matmul %438, %3, %cst_115 {dimension_numbers = #tpu.dot_dimension_numbers<[1], [0], [0], [1], [0, 0, 1, 1], [], []>} : vector<8x32xbf16>, vector<32x128xbf16>, vector<8x128xf32> -> vector<8x128xf32>
    %440 = arith.addf %437, %439 : vector<8x128xf32>
    %441 = vector.extract_strided_slice %440 {offsets = [0, 0], sizes = [8, 32], strides = [1, 1]} : vector<8x128xf32> to vector<8x32xf32>
    %442 = arith.negf %441 : vector<8x32xf32>
    %443 = math.exp %442 : vector<8x32xf32>
    %cst_116 = arith.constant 1.000000e+00 : f32
    %444 = vector.broadcast %cst_116 : f32 to vector<8x32xf32>
    %445 = arith.addf %444, %443 : vector<8x32xf32>
    %446 = arith.divf %444, %445 : vector<8x32xf32>
    %447 = vector.extract_strided_slice %440 {offsets = [0, 32], sizes = [8, 32], strides = [1, 1]} : vector<8x128xf32> to vector<8x32xf32>
    %448 = arith.negf %447 : vector<8x32xf32>
    %449 = math.exp %448 : vector<8x32xf32>
    %cst_117 = arith.constant 1.000000e+00 : f32
    %450 = vector.broadcast %cst_117 : f32 to vector<8x32xf32>
    %451 = arith.addf %450, %449 : vector<8x32xf32>
    %452 = arith.divf %450, %451 : vector<8x32xf32>
    %453 = vector.extract_strided_slice %440 {offsets = [0, 64], sizes = [8, 32], strides = [1, 1]} : vector<8x128xf32> to vector<8x32xf32>
    %454 = math.tanh %453 : vector<8x32xf32>
    %455 = vector.extract_strided_slice %440 {offsets = [0, 96], sizes = [8, 32], strides = [1, 1]} : vector<8x128xf32> to vector<8x32xf32>
    %456 = arith.negf %455 : vector<8x32xf32>
    %457 = math.exp %456 : vector<8x32xf32>
    %cst_118 = arith.constant 1.000000e+00 : f32
    %458 = vector.broadcast %cst_118 : f32 to vector<8x32xf32>
    %459 = arith.addf %458, %457 : vector<8x32xf32>
    %460 = arith.divf %458, %459 : vector<8x32xf32>
    %461 = arith.mulf %452, %392 : vector<8x32xf32>
    %462 = arith.mulf %446, %454 : vector<8x32xf32>
    %463 = arith.addf %461, %462 : vector<8x32xf32>
    %464 = math.tanh %463 : vector<8x32xf32>
    %465 = arith.mulf %460, %464 : vector<8x32xf32>
    %466 = arith.index_cast %c6_i32 : i32 to index
    %c0_119 = arith.constant 0 : index
    %c0_120 = arith.constant 0 : index
    %467 = vector.load %arg5[%466, %c0_119, %c0_120] : memref<8x8x32xf32, #tpu.memory_space<vmem>>, vector<1x8x32xf32>
    %468 = vector.shape_cast %467 : vector<1x8x32xf32> to vector<8x32xf32>
    %469 = vector.shape_cast %465 : vector<8x32xf32> to vector<1x8x32xf32>
    tpu.vector_store %arg5[%466, %c0_119, %c0_120], %469 {strides = array<i32>} : memref<8x8x32xf32, #tpu.memory_space<vmem>>, vector<1x8x32xf32>,
    %c7_i32_121 = arith.constant 7 : i32
    %470 = arith.subi %c7_i32_121, %c6_i32 : i32
    %471 = arith.index_cast %470 : i32 to index
    %c0_122 = arith.constant 0 : index
    %c0_123 = arith.constant 0 : index
    %472 = vector.load %arg2[%471, %c0_122, %c0_123] : memref<8x8x128xf32, #tpu.memory_space<vmem>>, vector<1x8x128xf32>
    %473 = vector.shape_cast %472 : vector<1x8x128xf32> to vector<8x128xf32>
    %474 = arith.truncf %430 : vector<8x32xf32> to vector<8x32xbf16>
    %cst_124 = arith.constant dense<0.000000e+00> : vector<8x128xf32>
    %475 = tpu.matmul %474, %4, %cst_124 {dimension_numbers = #tpu.dot_dimension_numbers<[1], [0], [0], [1], [0, 0, 1, 1], [], []>} : vector<8x32xbf16>, vector<32x128xbf16>, vector<8x128xf32> -> vector<8x128xf32>
    %476 = arith.addf %473, %475 : vector<8x128xf32>
    %477 = vector.extract_strided_slice %476 {offsets = [0, 0], sizes = [8, 32], strides = [1, 1]} : vector<8x128xf32> to vector<8x32xf32>
    %478 = arith.negf %477 : vector<8x32xf32>
    %479 = math.exp %478 : vector<8x32xf32>
    %cst_125 = arith.constant 1.000000e+00 : f32
    %480 = vector.broadcast %cst_125 : f32 to vector<8x32xf32>
    %481 = arith.addf %480, %479 : vector<8x32xf32>
    %482 = arith.divf %480, %481 : vector<8x32xf32>
    %483 = vector.extract_strided_slice %476 {offsets = [0, 32], sizes = [8, 32], strides = [1, 1]} : vector<8x128xf32> to vector<8x32xf32>
    %484 = arith.negf %483 : vector<8x32xf32>
    %485 = math.exp %484 : vector<8x32xf32>
    %cst_126 = arith.constant 1.000000e+00 : f32
    %486 = vector.broadcast %cst_126 : f32 to vector<8x32xf32>
    %487 = arith.addf %486, %485 : vector<8x32xf32>
    %488 = arith.divf %486, %487 : vector<8x32xf32>
    %489 = vector.extract_strided_slice %476 {offsets = [0, 64], sizes = [8, 32], strides = [1, 1]} : vector<8x128xf32> to vector<8x32xf32>
    %490 = math.tanh %489 : vector<8x32xf32>
    %491 = vector.extract_strided_slice %476 {offsets = [0, 96], sizes = [8, 32], strides = [1, 1]} : vector<8x128xf32> to vector<8x32xf32>
    %492 = arith.negf %491 : vector<8x32xf32>
    %493 = math.exp %492 : vector<8x32xf32>
    %cst_127 = arith.constant 1.000000e+00 : f32
    %494 = vector.broadcast %cst_127 : f32 to vector<8x32xf32>
    %495 = arith.addf %494, %493 : vector<8x32xf32>
    %496 = arith.divf %494, %495 : vector<8x32xf32>
    %497 = arith.mulf %488, %428 : vector<8x32xf32>
    %498 = arith.mulf %482, %490 : vector<8x32xf32>
    %499 = arith.addf %497, %498 : vector<8x32xf32>
    %500 = math.tanh %499 : vector<8x32xf32>
    %501 = arith.mulf %496, %500 : vector<8x32xf32>
    %502 = arith.index_cast %470 : i32 to index
    %c0_128 = arith.constant 0 : index
    %c0_129 = arith.constant 0 : index
    %503 = vector.load %arg6[%502, %c0_128, %c0_129] : memref<8x8x32xf32, #tpu.memory_space<vmem>>, vector<1x8x32xf32>
    %504 = vector.shape_cast %503 : vector<1x8x32xf32> to vector<8x32xf32>
    %505 = vector.shape_cast %501 : vector<8x32xf32> to vector<1x8x32xf32>
    tpu.vector_store %arg6[%502, %c0_128, %c0_129], %505 {strides = array<i32>} : memref<8x8x32xf32, #tpu.memory_space<vmem>>, vector<1x8x32xf32>,
    %c7_i32_130 = arith.constant 7 : i32
    %506 = arith.index_cast %c7_i32_130 : i32 to index
    %c0_131 = arith.constant 0 : index
    %c0_132 = arith.constant 0 : index
    %507 = vector.load %arg1[%506, %c0_131, %c0_132] : memref<8x8x128xf32, #tpu.memory_space<vmem>>, vector<1x8x128xf32>
    %508 = vector.shape_cast %507 : vector<1x8x128xf32> to vector<8x128xf32>
    %509 = arith.truncf %465 : vector<8x32xf32> to vector<8x32xbf16>
    %cst_133 = arith.constant dense<0.000000e+00> : vector<8x128xf32>
    %510 = tpu.matmul %509, %3, %cst_133 {dimension_numbers = #tpu.dot_dimension_numbers<[1], [0], [0], [1], [0, 0, 1, 1], [], []>} : vector<8x32xbf16>, vector<32x128xbf16>, vector<8x128xf32> -> vector<8x128xf32>
    %511 = arith.addf %508, %510 : vector<8x128xf32>
    %512 = vector.extract_strided_slice %511 {offsets = [0, 0], sizes = [8, 32], strides = [1, 1]} : vector<8x128xf32> to vector<8x32xf32>
    %513 = arith.negf %512 : vector<8x32xf32>
    %514 = math.exp %513 : vector<8x32xf32>
    %cst_134 = arith.constant 1.000000e+00 : f32
    %515 = vector.broadcast %cst_134 : f32 to vector<8x32xf32>
    %516 = arith.addf %515, %514 : vector<8x32xf32>
    %517 = arith.divf %515, %516 : vector<8x32xf32>
    %518 = vector.extract_strided_slice %511 {offsets = [0, 32], sizes = [8, 32], strides = [1, 1]} : vector<8x128xf32> to vector<8x32xf32>
    %519 = arith.negf %518 : vector<8x32xf32>
    %520 = math.exp %519 : vector<8x32xf32>
    %cst_135 = arith.constant 1.000000e+00 : f32
    %521 = vector.broadcast %cst_135 : f32 to vector<8x32xf32>
    %522 = arith.addf %521, %520 : vector<8x32xf32>
    %523 = arith.divf %521, %522 : vector<8x32xf32>
    %524 = vector.extract_strided_slice %511 {offsets = [0, 64], sizes = [8, 32], strides = [1, 1]} : vector<8x128xf32> to vector<8x32xf32>
    %525 = math.tanh %524 : vector<8x32xf32>
    %526 = vector.extract_strided_slice %511 {offsets = [0, 96], sizes = [8, 32], strides = [1, 1]} : vector<8x128xf32> to vector<8x32xf32>
    %527 = arith.negf %526 : vector<8x32xf32>
    %528 = math.exp %527 : vector<8x32xf32>
    %cst_136 = arith.constant 1.000000e+00 : f32
    %529 = vector.broadcast %cst_136 : f32 to vector<8x32xf32>
    %530 = arith.addf %529, %528 : vector<8x32xf32>
    %531 = arith.divf %529, %530 : vector<8x32xf32>
    %532 = arith.mulf %523, %463 : vector<8x32xf32>
    %533 = arith.mulf %517, %525 : vector<8x32xf32>
    %534 = arith.addf %532, %533 : vector<8x32xf32>
    %535 = math.tanh %534 : vector<8x32xf32>
    %536 = arith.mulf %531, %535 : vector<8x32xf32>
    %537 = arith.index_cast %c7_i32_130 : i32 to index
    %c0_137 = arith.constant 0 : index
    %c0_138 = arith.constant 0 : index
    %538 = vector.load %arg5[%537, %c0_137, %c0_138] : memref<8x8x32xf32, #tpu.memory_space<vmem>>, vector<1x8x32xf32>
    %539 = vector.shape_cast %538 : vector<1x8x32xf32> to vector<8x32xf32>
    %540 = vector.shape_cast %536 : vector<8x32xf32> to vector<1x8x32xf32>
    tpu.vector_store %arg5[%537, %c0_137, %c0_138], %540 {strides = array<i32>} : memref<8x8x32xf32, #tpu.memory_space<vmem>>, vector<1x8x32xf32>,
    %c7_i32_139 = arith.constant 7 : i32
    %541 = arith.subi %c7_i32_139, %c7_i32_130 : i32
    %542 = arith.index_cast %541 : i32 to index
    %c0_140 = arith.constant 0 : index
    %c0_141 = arith.constant 0 : index
    %543 = vector.load %arg2[%542, %c0_140, %c0_141] : memref<8x8x128xf32, #tpu.memory_space<vmem>>, vector<1x8x128xf32>
    %544 = vector.shape_cast %543 : vector<1x8x128xf32> to vector<8x128xf32>
    %545 = arith.truncf %501 : vector<8x32xf32> to vector<8x32xbf16>
    %cst_142 = arith.constant dense<0.000000e+00> : vector<8x128xf32>
    %546 = tpu.matmul %545, %4, %cst_142 {dimension_numbers = #tpu.dot_dimension_numbers<[1], [0], [0], [1], [0, 0, 1, 1], [], []>} : vector<8x32xbf16>, vector<32x128xbf16>, vector<8x128xf32> -> vector<8x128xf32>
    %547 = arith.addf %544, %546 : vector<8x128xf32>
    %548 = vector.extract_strided_slice %547 {offsets = [0, 0], sizes = [8, 32], strides = [1, 1]} : vector<8x128xf32> to vector<8x32xf32>
    %549 = arith.negf %548 : vector<8x32xf32>
    %550 = math.exp %549 : vector<8x32xf32>
    %cst_143 = arith.constant 1.000000e+00 : f32
    %551 = vector.broadcast %cst_143 : f32 to vector<8x32xf32>
    %552 = arith.addf %551, %550 : vector<8x32xf32>
    %553 = arith.divf %551, %552 : vector<8x32xf32>
    %554 = vector.extract_strided_slice %547 {offsets = [0, 32], sizes = [8, 32], strides = [1, 1]} : vector<8x128xf32> to vector<8x32xf32>
    %555 = arith.negf %554 : vector<8x32xf32>
    %556 = math.exp %555 : vector<8x32xf32>
    %cst_144 = arith.constant 1.000000e+00 : f32
    %557 = vector.broadcast %cst_144 : f32 to vector<8x32xf32>
    %558 = arith.addf %557, %556 : vector<8x32xf32>
    %559 = arith.divf %557, %558 : vector<8x32xf32>
    %560 = vector.extract_strided_slice %547 {offsets = [0, 64], sizes = [8, 32], strides = [1, 1]} : vector<8x128xf32> to vector<8x32xf32>
    %561 = math.tanh %560 : vector<8x32xf32>
    %562 = vector.extract_strided_slice %547 {offsets = [0, 96], sizes = [8, 32], strides = [1, 1]} : vector<8x128xf32> to vector<8x32xf32>
    %563 = arith.negf %562 : vector<8x32xf32>
    %564 = math.exp %563 : vector<8x32xf32>
    %cst_145 = arith.constant 1.000000e+00 : f32
    %565 = vector.broadcast %cst_145 : f32 to vector<8x32xf32>
    %566 = arith.addf %565, %564 : vector<8x32xf32>
    %567 = arith.divf %565, %566 : vector<8x32xf32>
    %568 = arith.mulf %559, %499 : vector<8x32xf32>
    %569 = arith.mulf %553, %561 : vector<8x32xf32>
    %570 = arith.addf %568, %569 : vector<8x32xf32>
    %571 = math.tanh %570 : vector<8x32xf32>
    %572 = arith.mulf %567, %571 : vector<8x32xf32>
    %573 = arith.index_cast %541 : i32 to index
    %c0_146 = arith.constant 0 : index
    %c0_147 = arith.constant 0 : index
    %574 = vector.load %arg6[%573, %c0_146, %c0_147] : memref<8x8x32xf32, #tpu.memory_space<vmem>>, vector<1x8x32xf32>
    %575 = vector.shape_cast %574 : vector<1x8x32xf32> to vector<8x32xf32>
    %576 = vector.shape_cast %572 : vector<8x32xf32> to vector<1x8x32xf32>
    tpu.vector_store %arg6[%573, %c0_146, %c0_147], %576 {strides = array<i32>} : memref<8x8x32xf32, #tpu.memory_space<vmem>>, vector<1x8x32xf32>,
    %c8_i32 = arith.constant 8 : i32
    %c0_148 = arith.constant 0 : index
    %c0_149 = arith.constant 0 : index
    %577 = vector.load %arg7[%c0_148, %c0_149] : memref<8x32xf32, #tpu.memory_space<vmem>>, vector<8x32xf32>
    tpu.vector_store %arg7[%c0_148, %c0_149], %536 {strides = array<i32>} : memref<8x32xf32, #tpu.memory_space<vmem>>, vector<8x32xf32>,
    %c0_150 = arith.constant 0 : index
    %c0_151 = arith.constant 0 : index
    %578 = vector.load %arg8[%c0_150, %c0_151] : memref<8x32xf32, #tpu.memory_space<vmem>>, vector<8x32xf32>
    tpu.vector_store %arg8[%c0_150, %c0_151], %534 {strides = array<i32>} : memref<8x32xf32, #tpu.memory_space<vmem>>, vector<8x32xf32>,
    %c0_152 = arith.constant 0 : index
    %c0_153 = arith.constant 0 : index
    %579 = vector.load %arg9[%c0_152, %c0_153] : memref<8x32xf32, #tpu.memory_space<vmem>>, vector<8x32xf32>
    tpu.vector_store %arg9[%c0_152, %c0_153], %572 {strides = array<i32>} : memref<8x32xf32, #tpu.memory_space<vmem>>, vector<8x32xf32>,
    %c0_154 = arith.constant 0 : index
    %c0_155 = arith.constant 0 : index
    %580 = vector.load %arg10[%c0_154, %c0_155] : memref<8x32xf32, #tpu.memory_space<vmem>>, vector<8x32xf32>
    tpu.vector_store %arg10[%c0_154, %c0_155], %570 {strides = array<i32>} : memref<8x32xf32, #tpu.memory_space<vmem>>, vector<8x32xf32>,
    return
  }
  func.func @transform_0(%arg0: i32) -> (i32, i32, i32) {
    %c0_i32 = arith.constant 0 : i32
    %c0_i32_0 = arith.constant 0 : i32
    %c0_i32_1 = arith.constant 0 : i32
    return %arg0, %c0_i32, %c0_i32_0 : i32, i32, i32
  }
  func.func @transform_1(%arg0: i32) -> (i32, i32, i32) {
    %c0_i32 = arith.constant 0 : i32
    %0 = arith.subi %c0_i32, %arg0 : i32
    %c0_i32_0 = arith.constant 0 : i32
    %c0_i32_1 = arith.constant 0 : i32
    %c0_i32_2 = arith.constant 0 : i32
    return %0, %c0_i32_0, %c0_i32_1 : i32, i32, i32
  }
  func.func @transform_2(%arg0: i32) -> (i32, i32) {
    %c0_i32 = arith.constant 0 : i32
    %c0_i32_0 = arith.constant 0 : i32
    %c0_i32_1 = arith.constant 0 : i32
    return %c0_i32, %c0_i32_0 : i32, i32
  }
  func.func @transform_3(%arg0: i32) -> (i32, i32) {
    %c0_i32 = arith.constant 0 : i32
    %c0_i32_0 = arith.constant 0 : i32
    %c0_i32_1 = arith.constant 0 : i32
    return %c0_i32, %c0_i32_0 : i32, i32
  }
  func.func @transform_4(%arg0: i32) -> (i32, i32, i32) {
    %c0_i32 = arith.constant 0 : i32
    %c0_i32_0 = arith.constant 0 : i32
    %c0_i32_1 = arith.constant 0 : i32
    return %arg0, %c0_i32, %c0_i32_0 : i32, i32, i32
  }
  func.func @transform_5(%arg0: i32) -> (i32, i32, i32) {
    %c0_i32 = arith.constant 0 : i32
    %0 = arith.subi %c0_i32, %arg0 : i32
    %c0_i32_0 = arith.constant 0 : i32
    %c0_i32_1 = arith.constant 0 : i32
    %c0_i32_2 = arith.constant 0 : i32
    return %0, %c0_i32_0, %c0_i32_1 : i32, i32, i32
  }
}

</mosaic_0001>

<llo_original>
// kernel: rnn_forward.6
$region0: #{rnn_forward.6}
  #allocation0 [shape = 'u32[]', space=smem, size = 0x4, offset = 0x4, fixed_abs, tag = 'smem constant byte address 0x4 - core index']
  #allocation1 [shape = 'u32[144,128]{1,0:T(1,128)}', space=vmem, size = 0x12000, scoped, tag = 'internal scratch']
  %s0 = inlined_call_operand.vmem [shape: bf16[64,64], index: 0, kind: input, shape index: {}]
  %s1 = inlined_call_operand.vmem [shape: bf16[64,256], index: 1, kind: input, shape index: {}]
  %s2 = inlined_call_operand.vmem [shape: f32[1,256], index: 2, kind: input, shape index: {}]
  %s3 = inlined_call_operand.vmem [shape: f32[64,256], index: 3, kind: output, shape index: {}]
  %s4 = sld [smem:[#allocation0]]
  $region22: #{rnn_forward.6} parent=0
    _
  %s6 = ssub.s32 1, %s4
  %s7 = scalar_select 0, %s6, %s4
  // Predicated region
  $region2: #{rnn_forward.6} parent=0 // pred_check
    _
  $region3: #{rnn_forward.6} parent=0 // pred_check_branch
    %9 = sbr.rel (0) target = $region5
  $region4: #{rnn_forward.6} parent=0 // pred_region
    _
  $region5: #{rnn_forward.6} parent=0 // pred_fallthru
    _
  // Predicated region
  $region6: #{rnn_forward.6} parent=0 // pred_check
    _
  $region7: #{rnn_forward.6} parent=0 // pred_check_branch
    %11 = sbr.rel (0) target = $region9
  $region8: #{rnn_forward.6} parent=0 // pred_region
    _
  $region9: #{rnn_forward.6} parent=0 // pred_fallthru
    _
  // Predicated region
  $region10: #{rnn_forward.6} parent=0 // pred_check
    _
  $region11: #{rnn_forward.6} parent=0 // pred_check_branch
    %13 = sbr.rel (0) target = $region13
  $region12: #{rnn_forward.6} parent=0 // pred_region
    _
  $region13: #{rnn_forward.6} parent=0 // pred_fallthru
    _
  %v15 = vld [vmem:[%s0] sm:$0xf]
  %v16 = vld [vmem:[%s0 + $0x4] sm:$0xf]
  %v17 = vld [vmem:[%s0 + $0x8] sm:$0xf]
  %v18 = vld [vmem:[%s0 + $0xc] sm:$0xf]
  %v19 = vld [vmem:[%s0 + $0x10] sm:$0xf]
  %v20 = vld [vmem:[%s0 + $0x14] sm:$0xf]
  %v21 = vld [vmem:[%s0 + $0x18] sm:$0xf]
  %v22 = vld [vmem:[%s0 + $0x1c] sm:$0xf]
  %v23 = vld [vmem:[%s1] sm:$0xff]
  %v24 = vld [vmem:[%s1 + $0x8] sm:$0xff]
  %v25 = vld [vmem:[%s1 + $0x10] sm:$0xff]
  %v26 = vld [vmem:[%s1 + $0x18] sm:$0xff]
  %v27 = vld [vmem:[%s1 + $0x20] sm:$0xff]
  %v28 = vld [vmem:[%s1 + $0x28] sm:$0xff]
  %v29 = vld [vmem:[%s1 + $0x30] sm:$0xff]
  %v30 = vld [vmem:[%s1 + $0x38] sm:$0xff]
  %v31 = vld [vmem:[%s2] sm:$0x3]
  %v33 = vlaneseq
  %v34 = vshrl.u32 %v33, 7
  %v35 = vsub.s32 0, %v34
  %v36 = vrot.slane %v31, %v35
  %v37 = vlaneseq
  %v38 = vshrl.u32 %v37, 7
  %v39 = vsub.s32 1, %v38
  %v40 = vrot.slane %v31, %v39
  %v51 = vunpack.c.l.b16 %v15
  %v52 = vunpack.c.l.b16 %v16
  %v53 = vunpack.c.l.b16 %v17
  %v54 = vunpack.c.l.b16 %v18
  %v55 = vunpack.c.l.b16 %v19
  %v56 = vunpack.c.l.b16 %v20
  %v57 = vunpack.c.l.b16 %v21
  %v58 = vunpack.c.l.b16 %v22
  %v59 = vpack.c.b16 %v52, %v51
  %v60 = vpack.c.b16 %v54, %v53
  %v61 = vpack.c.b16 %v56, %v55
  %v62 = vpack.c.b16 %v58, %v57
  %v71 = vunpack.c.l.b16 %v23
  %v72 = vunpack.c.h.b16 %v23
  %v73 = vunpack.c.l.b16 %v24
  %v74 = vunpack.c.h.b16 %v24
  %v75 = vunpack.c.l.b16 %v25
  %v76 = vunpack.c.h.b16 %v25
  %v77 = vunpack.c.l.b16 %v26
  %v78 = vunpack.c.h.b16 %v26
  %v79 = vunpack.c.l.b16 %v27
  %v80 = vunpack.c.h.b16 %v27
  %v81 = vunpack.c.l.b16 %v28
  %v82 = vunpack.c.h.b16 %v28
  %v83 = vunpack.c.l.b16 %v29
  %v84 = vunpack.c.h.b16 %v29
  %v85 = vunpack.c.l.b16 %v30
  %v86 = vunpack.c.h.b16 %v30
  %v87 = vpack.c.b16 %v73, %v71
  %v88 = vpack.c.b16 %v74, %v72
  %v89 = vpack.c.b16 %v77, %v75
  %v90 = vpack.c.b16 %v78, %v76
  %v91 = vpack.c.b16 %v81, %v79
  %v92 = vpack.c.b16 %v82, %v80
  %v93 = vpack.c.b16 %v85, %v83
  %v94 = vpack.c.b16 %v86, %v84
  %vm103 = vcmask 523264
  %v105 = vsel %vm103, %v59, 0
  %v108 = vsel %vm103, %v60, 0
  %v111 = vsel %vm103, %v61, 0
  %v114 = vsel %vm103, %v62, 0
  %116 = vmatprep.subr.bf16.mxu0 0
  %117 = vmatpush1.bf16.msra.mxu0 0
  %118 = vmatprep.subr.bf16.mxu0 0
  %119 = vmatpush1.bf16.msra.mxu0 0
  %120 = vmatprep.subr.bf16.mxu0 0
  %121 = vmatpush1.bf16.msra.mxu0 0
  %122 = vmatprep.subr.bf16.mxu0 0
  %123 = vmatpush1.bf16.msra.mxu0 0
  %124 = vmatprep.subr.bf16.mxu0 %v94
  %125 = vmatpush1.bf16.msra.mxu0 %v93
  %126 = vmatprep.subr.bf16.mxu0 %v92
  %127 = vmatpush1.bf16.msra.mxu0 %v91
  %128 = vmatprep.subr.bf16.mxu0 %v90
  %129 = vmatpush1.bf16.msra.mxu0 %v89
  %130 = vmatprep.subr.bf16.mxu0 %v88
  %131 = vmatpush1.bf16.msra.mxu0 %v87
  %132 = vmatprep.subr.bf16.mxu0 0
  %133 = vmatpush2.bf16.msra.mxu0 0
  %134 = vmatprep.subr.bf16.mxu0 0
  %135 = vmatpush2.bf16.msra.mxu0 0
  %136 = vmatprep.subr.bf16.mxu0 0
  %137 = vmatpush2.bf16.msra.mxu0 0
  %138 = vmatprep.subr.bf16.mxu0 0
  %139 = vmatpush2.bf16.msra.mxu0 0
  %140 = vmatprep.subr.bf16.mxu0 0
  %141 = vmatpush2.bf16.msra.mxu0 0
  %142 = vmatprep.subr.bf16.mxu0 0
  %143 = vmatpush2.bf16.msra.mxu0 0
  %144 = vmatprep.subr.bf16.mxu0 0
  %145 = vmatpush2.bf16.msra.mxu0 0
  %146 = vmatprep.subr.bf16.mxu0 0
  %147 = vmatpush2.bf16.msra.mxu0 0
  %148 = vmatprep.mubr.bf16.mxu0 0
  %149 = vmatmul.mubr.bf16.gmra.mxu0 %v105
  %v150 = vpop.f32.mrf.mxu0
  %v151 = vadd.f32 %v36, %v150
  %v152 = vpop.f32.mrf.mxu0
  %v153 = vadd.f32 %v40, %v152
  %v154 = vpop.f32.mrf.mxu0
  %v155 = vadd.f32 %v36, %v154
  %v156 = vpop.f32.mrf.mxu0
  %v157 = vadd.f32 %v40, %v156
  %158 = vmatprep.mubr.bf16.mxu0 0
  %159 = vmatmul.mubr.bf16.gmra.mxu0 %v108
  %v160 = vpop.f32.mrf.mxu0
  %v161 = vadd.f32 %v36, %v160
  %v162 = vpop.f32.mrf.mxu0
  %v163 = vadd.f32 %v40, %v162
  %v164 = vpop.f32.mrf.mxu0
  %v165 = vadd.f32 %v36, %v164
  %v166 = vpop.f32.mrf.mxu0
  %v167 = vadd.f32 %v40, %v166
  %168 = vmatprep.mubr.bf16.mxu0 0
  %169 = vmatmul.mubr.bf16.gmra.mxu0 %v111
  %v170 = vpop.f32.mrf.mxu0
  %v171 = vadd.f32 %v36, %v170
  %v172 = vpop.f32.mrf.mxu0
  %v173 = vadd.f32 %v40, %v172
  %v174 = vpop.f32.mrf.mxu0
  %v175 = vadd.f32 %v36, %v174
  %v176 = vpop.f32.mrf.mxu0
  %v177 = vadd.f32 %v40, %v176
  %178 = vmatprep.mubr.bf16.mxu0 0
  %179 = vmatmul.mubr.bf16.gmra.mxu0 %v114
  %v180 = vpop.f32.mrf.mxu0
  %v181 = vadd.f32 %v36, %v180
  %v182 = vpop.f32.mrf.mxu0
  %v183 = vadd.f32 %v40, %v182
  %v184 = vpop.f32.mrf.mxu0
  %v185 = vadd.f32 %v36, %v184
  %v186 = vpop.f32.mrf.mxu0
  %v187 = vadd.f32 %v40, %v186
  %188 = vdwg.mxu0
  %189 = vst [vmem:[%s3] sm:$0xff] %v151
  %190 = vst [vmem:[%s3 + $0x8] sm:$0xff] %v153
  %191 = vst [vmem:[%s3 + $0x10] sm:$0xff] %v155
  %192 = vst [vmem:[%s3 + $0x18] sm:$0xff] %v157
  %193 = vst [vmem:[%s3 + $0x20] sm:$0xff] %v161
  %194 = vst [vmem:[%s3 + $0x28] sm:$0xff] %v163
  %195 = vst [vmem:[%s3 + $0x30] sm:$0xff] %v165
  %196 = vst [vmem:[%s3 + $0x38] sm:$0xff] %v167
  %197 = vst [vmem:[%s3 + $0x40] sm:$0xff] %v171
  %198 = vst [vmem:[%s3 + $0x48] sm:$0xff] %v173
  %199 = vst [vmem:[%s3 + $0x50] sm:$0xff] %v175
  %200 = vst [vmem:[%s3 + $0x58] sm:$0xff] %v177
  %201 = vst [vmem:[%s3 + $0x60] sm:$0xff] %v181
  %202 = vst [vmem:[%s3 + $0x68] sm:$0xff] %v183
  %203 = vst [vmem:[%s3 + $0x70] sm:$0xff] %v185
  %204 = vst [vmem:[%s3 + $0x78] sm:$0xff] %v187
  // Predicated region
  $region14: #{rnn_forward.6} parent=0 // pred_check
    _
  $region15: #{rnn_forward.6} parent=0 // pred_check_branch
    %206 = sbr.rel (0) target = $region17
  $region16: #{rnn_forward.6} parent=0 // pred_region
    _
  $region17: #{rnn_forward.6} parent=0 // pred_fallthru
    _
  // Predicated region
  $region18: #{rnn_forward.6} parent=0 // pred_check
    _
  $region19: #{rnn_forward.6} parent=0 // pred_check_branch
    %208 = sbr.rel (0) target = $region21
  $region20: #{rnn_forward.6} parent=0 // pred_region
    _
  $region21: #{rnn_forward.6} parent=0 // pred_fallthru
    _

// kernel: rnn_forward.4
$region0: #{rnn_forward.4}
  #allocation0 [shape = 'u32[]', space=smem, size = 0x4, offset = 0x4, fixed_abs, tag = 'smem constant byte address 0x4 - core index']
  #allocation1 [shape = 'u32[144,128]{1,0:T(1,128)}', space=vmem, size = 0x12000, scoped, tag = 'internal scratch']
  %s0 = inlined_call_operand.vmem [shape: bf16[64,16], index: 0, kind: input, shape index: {}]
  %s1 = inlined_call_operand.vmem [shape: bf16[16,256], index: 1, kind: input, shape index: {}]
  %s2 = inlined_call_operand.vmem [shape: f32[1,256], index: 2, kind: input, shape index: {}]
  %s3 = inlined_call_operand.vmem [shape: f32[64,256], index: 3, kind: output, shape index: {}]
  %s4 = sld [smem:[#allocation0]]
  $region22: #{rnn_forward.4} parent=0
    _
  %s6 = ssub.s32 1, %s4
  %s7 = scalar_select 0, %s6, %s4
  // Predicated region
  $region2: #{rnn_forward.4} parent=0 // pred_check
    _
  $region3: #{rnn_forward.4} parent=0 // pred_check_branch
    %9 = sbr.rel (0) target = $region5
  $region4: #{rnn_forward.4} parent=0 // pred_region
    _
  $region5: #{rnn_forward.4} parent=0 // pred_fallthru
    _
  // Predicated region
  $region6: #{rnn_forward.4} parent=0 // pred_check
    _
  $region7: #{rnn_forward.4} parent=0 // pred_check_branch
    %11 = sbr.rel (0) target = $region9
  $region8: #{rnn_forward.4} parent=0 // pred_region
    _
  $region9: #{rnn_forward.4} parent=0 // pred_fallthru
    _
  // Predicated region
  $region10: #{rnn_forward.4} parent=0 // pred_check
    _
  $region11: #{rnn_forward.4} parent=0 // pred_check_branch
    %13 = sbr.rel (0) target = $region13
  $region12: #{rnn_forward.4} parent=0 // pred_region
    _
  $region13: #{rnn_forward.4} parent=0 // pred_fallthru
    _
  %v15 = vld [vmem:[%s0] sm:$0xf]
  %v16 = vld [vmem:[%s0 + $0x4] sm:$0xf]
  %v17 = vld [vmem:[%s0 + $0x8] sm:$0xf]
  %v18 = vld [vmem:[%s0 + $0xc] sm:$0xf]
  %v19 = vld [vmem:[%s0 + $0x10] sm:$0xf]
  %v20 = vld [vmem:[%s0 + $0x14] sm:$0xf]
  %v21 = vld [vmem:[%s0 + $0x18] sm:$0xf]
  %v22 = vld [vmem:[%s0 + $0x1c] sm:$0xf]
  %v23 = vld [vmem:[%s1] sm:$0xff]
  %v24 = vld [vmem:[%s1 + $0x8] sm:$0xff]
  %v25 = vld [vmem:[%s2] sm:$0x3]
  %v27 = vlaneseq
  %v28 = vshrl.u32 %v27, 7
  %v29 = vsub.s32 0, %v28
  %v30 = vrot.slane %v25, %v29
  %v31 = vlaneseq
  %v32 = vshrl.u32 %v31, 7
  %v33 = vsub.s32 1, %v32
  %v34 = vrot.slane %v25, %v33
  %v45 = vunpack.c.l.b16 %v15
  %v46 = vunpack.c.l.b16 %v16
  %v47 = vunpack.c.l.b16 %v17
  %v48 = vunpack.c.l.b16 %v18
  %v49 = vunpack.c.l.b16 %v19
  %v50 = vunpack.c.l.b16 %v20
  %v51 = vunpack.c.l.b16 %v21
  %v52 = vunpack.c.l.b16 %v22
  %v53 = vpack.c.b16 %v46, %v45
  %v54 = vpack.c.b16 %v48, %v47
  %v55 = vpack.c.b16 %v50, %v49
  %v56 = vpack.c.b16 %v52, %v51
  %v59 = vunpack.c.l.b16 %v23
  %v60 = vunpack.c.h.b16 %v23
  %v61 = vunpack.c.l.b16 %v24
  %v62 = vunpack.c.h.b16 %v24
  %v63 = vpack.c.b16 %v61, %v59
  %v64 = vpack.c.b16 %v62, %v60
  %vm67 = vcmask 130048
  %v69 = vsel %vm67, %v53, 0
  %v72 = vsel %vm67, %v54, 0
  %v75 = vsel %vm67, %v55, 0
  %v78 = vsel %vm67, %v56, 0
  %80 = vmatprep.subr.bf16.mxu0 0
  %81 = vmatpush1.bf16.msra.mxu0 0
  %82 = vmatprep.subr.bf16.mxu0 0
  %83 = vmatpush1.bf16.msra.mxu0 0
  %84 = vmatprep.subr.bf16.mxu0 0
  %85 = vmatpush1.bf16.msra.mxu0 0
  %86 = vmatprep.subr.bf16.mxu0 0
  %87 = vmatpush1.bf16.msra.mxu0 0
  %88 = vmatprep.subr.bf16.mxu0 0
  %89 = vmatpush1.bf16.msra.mxu0 0
  %90 = vmatprep.subr.bf16.mxu0 0
  %91 = vmatpush1.bf16.msra.mxu0 0
  %92 = vmatprep.subr.bf16.mxu0 0
  %93 = vmatpush1.bf16.msra.mxu0 0
  %94 = vmatprep.subr.bf16.mxu0 %v64
  %95 = vmatpush1.bf16.msra.mxu0 %v63
  %96 = vmatprep.subr.bf16.mxu0 0
  %97 = vmatpush2.bf16.msra.mxu0 0
  %98 = vmatprep.subr.bf16.mxu0 0
  %99 = vmatpush2.bf16.msra.mxu0 0
  %100 = vmatprep.subr.bf16.mxu0 0
  %101 = vmatpush2.bf16.msra.mxu0 0
  %102 = vmatprep.subr.bf16.mxu0 0
  %103 = vmatpush2.bf16.msra.mxu0 0
  %104 = vmatprep.subr.bf16.mxu0 0
  %105 = vmatpush2.bf16.msra.mxu0 0
  %106 = vmatprep.subr.bf16.mxu0 0
  %107 = vmatpush2.bf16.msra.mxu0 0
  %108 = vmatprep.subr.bf16.mxu0 0
  %109 = vmatpush2.bf16.msra.mxu0 0
  %110 = vmatprep.subr.bf16.mxu0 0
  %111 = vmatpush2.bf16.msra.mxu0 0
  %112 = vmatprep.mubr.bf16.mxu0 0
  %113 = vmatmul.mubr.bf16.gmra.mxu0 %v69
  %v114 = vpop.f32.mrf.mxu0
  %v115 = vadd.f32 %v30, %v114
  %v116 = vpop.f32.mrf.mxu0
  %v117 = vadd.f32 %v34, %v116
  %v118 = vpop.f32.mrf.mxu0
  %v119 = vadd.f32 %v30, %v118
  %v120 = vpop.f32.mrf.mxu0
  %v121 = vadd.f32 %v34, %v120
  %122 = vmatprep.mubr.bf16.mxu0 0
  %123 = vmatmul.mubr.bf16.gmra.mxu0 %v72
  %v124 = vpop.f32.mrf.mxu0
  %v125 = vadd.f32 %v30, %v124
  %v126 = vpop.f32.mrf.mxu0
  %v127 = vadd.f32 %v34, %v126
  %v128 = vpop.f32.mrf.mxu0
  %v129 = vadd.f32 %v30, %v128
  %v130 = vpop.f32.mrf.mxu0
  %v131 = vadd.f32 %v34, %v130
  %132 = vmatprep.mubr.bf16.mxu0 0
  %133 = vmatmul.mubr.bf16.gmra.mxu0 %v75
  %v134 = vpop.f32.mrf.mxu0
  %v135 = vadd.f32 %v30, %v134
  %v136 = vpop.f32.mrf.mxu0
  %v137 = vadd.f32 %v34, %v136
  %v138 = vpop.f32.mrf.mxu0
  %v139 = vadd.f32 %v30, %v138
  %v140 = vpop.f32.mrf.mxu0
  %v141 = vadd.f32 %v34, %v140
  %142 = vmatprep.mubr.bf16.mxu0 0
  %143 = vmatmul.mubr.bf16.gmra.mxu0 %v78
  %v144 = vpop.f32.mrf.mxu0
  %v145 = vadd.f32 %v30, %v144
  %v146 = vpop.f32.mrf.mxu0
  %v147 = vadd.f32 %v34, %v146
  %v148 = vpop.f32.mrf.mxu0
  %v149 = vadd.f32 %v30, %v148
  %v150 = vpop.f32.mrf.mxu0
  %v151 = vadd.f32 %v34, %v150
  %152 = vdwg.mxu0
  %153 = vst [vmem:[%s3] sm:$0xff] %v115
  %154 = vst [vmem:[%s3 + $0x8] sm:$0xff] %v117
  %155 = vst [vmem:[%s3 + $0x10] sm:$0xff] %v119
  %156 = vst [vmem:[%s3 + $0x18] sm:$0xff] %v121
  %157 = vst [vmem:[%s3 + $0x20] sm:$0xff] %v125
  %158 = vst [vmem:[%s3 + $0x28] sm:$0xff] %v127
  %159 = vst [vmem:[%s3 + $0x30] sm:$0xff] %v129
  %160 = vst [vmem:[%s3 + $0x38] sm:$0xff] %v131
  %161 = vst [vmem:[%s3 + $0x40] sm:$0xff] %v135
  %162 = vst [vmem:[%s3 + $0x48] sm:$0xff] %v137
  %163 = vst [vmem:[%s3 + $0x50] sm:$0xff] %v139
  %164 = vst [vmem:[%s3 + $0x58] sm:$0xff] %v141
  %165 = vst [vmem:[%s3 + $0x60] sm:$0xff] %v145
  %166 = vst [vmem:[%s3 + $0x68] sm:$0xff] %v147
  %167 = vst [vmem:[%s3 + $0x70] sm:$0xff] %v149
  %168 = vst [vmem:[%s3 + $0x78] sm:$0xff] %v151
  // Predicated region
  $region14: #{rnn_forward.4} parent=0 // pred_check
    _
  $region15: #{rnn_forward.4} parent=0 // pred_check_branch
    %170 = sbr.rel (0) target = $region17
  $region16: #{rnn_forward.4} parent=0 // pred_region
    _
  $region17: #{rnn_forward.4} parent=0 // pred_fallthru
    _
  // Predicated region
  $region18: #{rnn_forward.4} parent=0 // pred_check
    _
  $region19: #{rnn_forward.4} parent=0 // pred_check_branch
    %172 = sbr.rel (0) target = $region21
  $region20: #{rnn_forward.4} parent=0 // pred_region
    _
  $region21: #{rnn_forward.4} parent=0 // pred_fallthru
    _

// kernel: rnn_forward.5
$region0: #{rnn_forward.5}
  #allocation0 [shape = 'u32[]', space=smem, size = 0x4, offset = 0x4, fixed_abs, tag = 'smem constant byte address 0x4 - core index']
  #allocation1 [shape = 'u32[144,128]{1,0:T(1,128)}', space=vmem, size = 0x12000, scoped, tag = 'internal scratch']
  #allocation2 [shape = 'f32[8,32]{1,0:T(8,128)}', space=vmem, size = 0x1000, scoped, tag = 'scratch operand']
  #allocation3 [shape = 'f32[8,32]{1,0:T(8,128)}', space=vmem, size = 0x1000, scoped, tag = 'scratch operand']
  #allocation4 [shape = 'f32[8,32]{1,0:T(8,128)}', space=vmem, size = 0x1000, scoped, tag = 'scratch operand']
  #allocation5 [shape = 'f32[8,32]{1,0:T(8,128)}', space=vmem, size = 0x1000, scoped, tag = 'scratch operand']
  %s0 = inlined_call_operand.vmem [shape: f32[8,8,128], index: 0, kind: input, shape index: {}]
  %s1 = inlined_call_operand.vmem [shape: f32[8,8,128], index: 1, kind: input, shape index: {}]
  %s2 = inlined_call_operand.vmem [shape: bf16[32,128], index: 2, kind: input, shape index: {}]
  %s3 = inlined_call_operand.vmem [shape: bf16[32,128], index: 3, kind: input, shape index: {}]
  %s4 = inlined_call_operand.vmem [shape: f32[8,8,32], index: 4, kind: output, shape index: {0}]
  %s5 = inlined_call_operand.vmem [shape: f32[8,8,32], index: 5, kind: output, shape index: {1}]
  %6 = xla_tuple %s4, %s5
  %s7 = sld [smem:[#allocation0]]
  $region38: #{rnn_forward.5} parent=0
    _
  %s9 = ssub.s32 1, %s7
  %s10 = scalar_select 0, %s9, %s7
  // Predicated region
  $region2: #{rnn_forward.5} parent=0 // pred_check
    _
  $region3: #{rnn_forward.5} parent=0 // pred_check_branch
    %12 = sbr.rel (0) target = $region5
  $region4: #{rnn_forward.5} parent=0 // pred_region
    _
  $region5: #{rnn_forward.5} parent=0 // pred_fallthru
    _
  // Predicated region
  $region6: #{rnn_forward.5} parent=0 // pred_check
    _
  $region7: #{rnn_forward.5} parent=0 // pred_check_branch
    %14 = sbr.rel (0) target = $region9
  $region8: #{rnn_forward.5} parent=0 // pred_region
    %s15 = ssub.s32 0, 0
    %s16 = smul.u32 8, %s15
    %p17 = scmp.lt.s32.totalorder %s16, 7
    %s18 = scalar_select %p17, %s16, 7
    %s19 = smul.addr %s18, 8
    %s20 = scalar_lea.vmem %s1, %s19
    %s21 = ssub.s32 0, 0
    %s22 = smul.u32 8, %s21
  $region9: #{rnn_forward.5} parent=0 // pred_fallthru
    _
  // Predicated region
  $region10: #{rnn_forward.5} parent=0 // pred_check
    _
  $region11: #{rnn_forward.5} parent=0 // pred_check_branch
    %24 = sbr.rel (0) target = $region13
  $region12: #{rnn_forward.5} parent=0 // pred_region
    _
  $region13: #{rnn_forward.5} parent=0 // pred_fallthru
    _
  // Predicated region
  $region14: #{rnn_forward.5} parent=0 // pred_check
    _
  $region15: #{rnn_forward.5} parent=0 // pred_check_branch
    %26 = sbr.rel (0) target = $region17
  $region16: #{rnn_forward.5} parent=0 // pred_region
    _
  $region17: #{rnn_forward.5} parent=0 // pred_fallthru
    _
  %s27 = ssub.s32 0, 0
  %s28 = smul.u32 8, %s27
  %p29 = scmp.lt.s32.totalorder %s28, 7
  %s30 = scalar_select %p29, %s28, 7
  %s31 = smul.addr %s30, 8
  %s32 = scalar_lea.vmem %s1, %s31
  %s33 = ssub.s32 0, 0
  %s34 = smul.u32 8, %s33
  %p35 = scmp.lt.s32.totalorder %s34, 7
  %s36 = scalar_select %p35, %s34, 7
  %s37 = smul.addr %s36, 8
  %s38 = scalar_lea.vmem %s5, %s37
  %s39 = ssub.s32 0, 0
  %s40 = smul.u32 8, %s39
  %p41 = scmp.lt.s32.totalorder %s40, 7
  %s42 = scalar_select %p41, %s40, 7
  %s43 = smul.addr %s42, 8
  %s44 = scalar_lea.vmem %s1, %s43
  %s45 = ssub.s32 0, 0
  %s46 = smul.u32 8, %s45
  %s47 = ssub.s32 0, 0
  %s48 = smul.u32 8, %s47
  %p49 = scmp.lt.s32.totalorder %s48, 7
  %s50 = scalar_select %p49, %s48, 7
  %s51 = smul.addr %s50, 8
  %s52 = scalar_lea.vmem %s5, %s51
  %s53 = ssub.s32 0, 0
  %s54 = smul.u32 8, %s53
  %p56 = scmp.eq.s32.totalorder 0, 0
  // Predicated region
  $region18: #{rnn_forward.5} parent=0 // pred_check
    %p57 = pneg %p56
  $region19: #{rnn_forward.5} parent=0 // pred_check_branch
    %59 = sbr.rel (%p57) target = $region21
  $region20: #{rnn_forward.5} parent=0 // pred_region
    %vm60 = vcmask 261120
    %61 = vst.msk [vmem:[#allocation2] sm:$0xff] %vm60, 0.0
    %62 = vst.msk [vmem:[#allocation3] sm:$0xff] %vm60, 0.0
    %63 = vst.msk [vmem:[#allocation4] sm:$0xff] %vm60, 0.0
    %64 = vst.msk [vmem:[#allocation5] sm:$0xff] %vm60, 0.0
  $region21: #{rnn_forward.5} parent=0 // pred_fallthru
    _
  %v65 = vld [vmem:[%s2] sm:$0xf]
  %v66 = vld [vmem:[%s2 + $0x4] sm:$0xf]
  %v67 = vld [vmem:[%s2 + $0x8] sm:$0xf]
  %v68 = vld [vmem:[%s2 + $0xc] sm:$0xf]
  %v69 = vld [vmem:[%s3] sm:$0xf]
  %v70 = vld [vmem:[%s3 + $0x4] sm:$0xf]
  %v71 = vld [vmem:[%s3 + $0x8] sm:$0xf]
  %v72 = vld [vmem:[%s3 + $0xc] sm:$0xf]
  %v73 = vld [vmem:[#allocation2] sm:$0xff]
  %v74 = vld [vmem:[#allocation3] sm:$0xff]
  %v75 = vld [vmem:[#allocation4] sm:$0xff]
  %v76 = vld [vmem:[#allocation5] sm:$0xff]
  %v77 = vld [vmem:[%s0] sm:$0xff]
  %v78 = vpack.c.bf16 %v73, %v73
  %v83 = vunpack.c.l.b16 %v65
  %v84 = vunpack.c.l.b16 %v66
  %v85 = vunpack.c.l.b16 %v67
  %v86 = vunpack.c.l.b16 %v68
  %v87 = vpack.c.b16 %v84, %v83
  %v88 = vpack.c.b16 %v86, %v85
  %vm91 = vcmask 261120
  %v93 = vsel %vm91, %v78, 0
  %95 = vmatprep.subr.bf16.mxu0 0
  %96 = vmatpush1.bf16.msra.mxu0 0
  %97 = vmatprep.subr.bf16.mxu0 0
  %98 = vmatpush1.bf16.msra.mxu0 0
  %99 = vmatprep.subr.bf16.mxu0 0
  %100 = vmatpush1.bf16.msra.mxu0 0
  %101 = vmatprep.subr.bf16.mxu0 0
  %102 = vmatpush1.bf16.msra.mxu0 0
  %103 = vmatprep.subr.bf16.mxu0 0
  %104 = vmatpush1.bf16.msra.mxu0 0
  %105 = vmatprep.subr.bf16.mxu0 0
  %106 = vmatpush1.bf16.msra.mxu0 0
  %107 = vmatprep.subr.bf16.mxu0 0
  %108 = vmatpush1.bf16.msra.mxu0 %v88
  %109 = vmatprep.subr.bf16.mxu0 0
  %110 = vmatpush1.bf16.msra.mxu0 %v87
  %111 = vmatprep.subr.bf16.mxu0 0
  %112 = vmatpush2.bf16.msra.mxu0 0
  %113 = vmatprep.subr.bf16.mxu0 0
  %114 = vmatpush2.bf16.msra.mxu0 0
  %115 = vmatprep.subr.bf16.mxu0 0
  %116 = vmatpush2.bf16.msra.mxu0 0
  %117 = vmatprep.subr.bf16.mxu0 0
  %118 = vmatpush2.bf16.msra.mxu0 0
  %119 = vmatprep.subr.bf16.mxu0 0
  %120 = vmatpush2.bf16.msra.mxu0 0
  %121 = vmatprep.subr.bf16.mxu0 0
  %122 = vmatpush2.bf16.msra.mxu0 0
  %123 = vmatprep.subr.bf16.mxu0 0
  %124 = vmatpush2.bf16.msra.mxu0 0
  %125 = vmatprep.subr.bf16.mxu0 0
  %126 = vmatpush2.bf16.msra.mxu0 0
  %127 = vmatprep.mubr.bf16.mxu0 0
  %128 = vmatmul.mubr.bf16.gmra.mxu0 %v93
  %v129 = vpop.f32.mrf.mxu0
  %v130 = vadd.f32 0.0, %v129
  %v131 = vpop.f32.mrf.mxu0
  %v132 = vpop.f32.mrf.mxu0
  %v133 = vpop.f32.mrf.mxu0
  %134 = vdwg.mxu0
  %v135 = vadd.f32 %v77, %v130
  %v136 = vxor.u32 %v135, 2147483648
  %v137 = vmul.f32 %v136, 1.442695
  %v138 = vpow.pop %v137
  %v139 = vadd.f32 %v138, 1.0
  %v140 = vrcp.pop %v139
  %v141 = vmul.f32 1.0, %v140
  %v142 = vtanh.pop %v135
  %144 = vrot.lane.b32.xlu0 %v74, 32
  %v145 = vpop.permute.xlu0 %144
  %v147 = vmul.f32 %v141, %v145
  %149 = vrot.lane.b32.xlu0 %v142, 64
  %v150 = vpop.permute.xlu0 %149
  %v152 = vmul.f32 %v141, %v150
  %154 = vrot.lane.b32.xlu0 %v152, 32
  %v155 = vpop.permute.xlu0 %154
  %v157 = vadd.f32 %v147, %v155
  %v158 = vtanh.pop %v157
  %160 = vrot.lane.b32.xlu0 %v158, 64
  %v161 = vpop.permute.xlu0 %160
  %v163 = vmul.f32 %v141, %v161
  %165 = vrot.lane.b32.xlu0 %v163, 32
  %v166 = vpop.permute.xlu0 %165
  %168 = vst.msk [vmem:[%s4] sm:$0xff] %vm91, %v166
  %s169 = scalar_lea.vmem %s44, 56
  %v170 = vld [vmem:[%s169] sm:$0xff]
  %v171 = vpack.c.bf16 %v75, %v75
  %v176 = vunpack.c.l.b16 %v69
  %v177 = vunpack.c.l.b16 %v70
  %v178 = vunpack.c.l.b16 %v71
  %v179 = vunpack.c.l.b16 %v72
  %v180 = vpack.c.b16 %v177, %v176
  %v181 = vpack.c.b16 %v179, %v178
  %v185 = vsel %vm91, %v171, 0
  %187 = vmatprep.subr.bf16.mxu0 0
  %188 = vmatpush1.bf16.msra.mxu0 0
  %189 = vmatprep.subr.bf16.mxu0 0
  %190 = vmatpush1.bf16.msra.mxu0 0
  %191 = vmatprep.subr.bf16.mxu0 0
  %192 = vmatpush1.bf16.msra.mxu0 0
  %193 = vmatprep.subr.bf16.mxu0 0
  %194 = vmatpush1.bf16.msra.mxu0 0
  %195 = vmatprep.subr.bf16.mxu0 0
  %196 = vmatpush1.bf16.msra.mxu0 0
  %197 = vmatprep.subr.bf16.mxu0 0
  %198 = vmatpush1.bf16.msra.mxu0 0
  %199 = vmatprep.subr.bf16.mxu0 0
  %200 = vmatpush1.bf16.msra.mxu0 %v181
  %201 = vmatprep.subr.bf16.mxu0 0
  %202 = vmatpush1.bf16.msra.mxu0 %v180
  %203 = vmatprep.subr.bf16.mxu0 0
  %204 = vmatpush2.bf16.msra.mxu0 0
  %205 = vmatprep.subr.bf16.mxu0 0
  %206 = vmatpush2.bf16.msra.mxu0 0
  %207 = vmatprep.subr.bf16.mxu0 0
  %208 = vmatpush2.bf16.msra.mxu0 0
  %209 = vmatprep.subr.bf16.mxu0 0
  %210 = vmatpush2.bf16.msra.mxu0 0
  %211 = vmatprep.subr.bf16.mxu0 0
  %212 = vmatpush2.bf16.msra.mxu0 0
  %213 = vmatprep.subr.bf16.mxu0 0
  %214 = vmatpush2.bf16.msra.mxu0 0
  %215 = vmatprep.subr.bf16.mxu0 0
  %216 = vmatpush2.bf16.msra.mxu0 0
  %217 = vmatprep.subr.bf16.mxu0 0
  %218 = vmatpush2.bf16.msra.mxu0 0
  %219 = vmatprep.mubr.bf16.mxu0 0
  %220 = vmatmul.mubr.bf16.gmra.mxu0 %v185
  %v221 = vpop.f32.mrf.mxu0
  %v222 = vadd.f32 0.0, %v221
  %v223 = vpop.f32.mrf.mxu0
  %v224 = vpop.f32.mrf.mxu0
  %v225 = vpop.f32.mrf.mxu0
  %226 = vdwg.mxu0
  %v227 = vadd.f32 %v170, %v222
  %v228 = vxor.u32 %v227, 2147483648
  %v229 = vmul.f32 %v228, 1.442695
  %v230 = vpow.pop %v229
  %v231 = vadd.f32 %v230, 1.0
  %v232 = vrcp.pop %v231
  %v233 = vmul.f32 1.0, %v232
  %v234 = vtanh.pop %v227
  %236 = vrot.lane.b32.xlu0 %v76, 32
  %v237 = vpop.permute.xlu0 %236
  %v239 = vmul.f32 %v233, %v237
  %241 = vrot.lane.b32.xlu0 %v234, 64
  %v242 = vpop.permute.xlu0 %241
  %v244 = vmul.f32 %v233, %v242
  %246 = vrot.lane.b32.xlu0 %v244, 32
  %v247 = vpop.permute.xlu0 %246
  %v249 = vadd.f32 %v239, %v247
  %v250 = vtanh.pop %v249
  %252 = vrot.lane.b32.xlu0 %v250, 64
  %v253 = vpop.permute.xlu0 %252
  %v255 = vmul.f32 %v233, %v253
  %257 = vrot.lane.b32.xlu0 %v255, 32
  %v258 = vpop.permute.xlu0 %257
  %s260 = scalar_lea.vmem %s52, 56
  %261 = vst.msk [vmem:[%s260] sm:$0xff] %vm91, %v258
  %s262 = scalar_lea.vmem %s0, 8
  %v263 = vld [vmem:[%s262] sm:$0xff]
  %v264 = vpack.c.bf16 %v163, %v163
  %266 = vrot.lane.b32.xlu0 %v264, 32
  %v267 = vpop.permute.xlu0 %266
  %v269 = vsel %vm91, %v267, 0
  %271 = vmatprep.subr.bf16.mxu0 0
  %272 = vmatpush1.bf16.msra.mxu0 0
  %273 = vmatprep.subr.bf16.mxu0 0
  %274 = vmatpush1.bf16.msra.mxu0 0
  %275 = vmatprep.subr.bf16.mxu0 0
  %276 = vmatpush1.bf16.msra.mxu0 0
  %277 = vmatprep.subr.bf16.mxu0 0
  %278 = vmatpush1.bf16.msra.mxu0 0
  %279 = vmatprep.subr.bf16.mxu0 0
  %280 = vmatpush1.bf16.msra.mxu0 0
  %281 = vmatprep.subr.bf16.mxu0 0
  %282 = vmatpush1.bf16.msra.mxu0 0
  %283 = vmatprep.subr.bf16.mxu0 0
  %284 = vmatpush1.bf16.msra.mxu0 %v88
  %285 = vmatprep.subr.bf16.mxu0 0
  %286 = vmatpush1.bf16.msra.mxu0 %v87
  %287 = vmatprep.subr.bf16.mxu0 0
  %288 = vmatpush2.bf16.msra.mxu0 0
  %289 = vmatprep.subr.bf16.mxu0 0
  %290 = vmatpush2.bf16.msra.mxu0 0
  %291 = vmatprep.subr.bf16.mxu0 0
  %292 = vmatpush2.bf16.msra.mxu0 0
  %293 = vmatprep.subr.bf16.mxu0 0
  %294 = vmatpush2.bf16.msra.mxu0 0
  %295 = vmatprep.subr.bf16.mxu0 0
  %296 = vmatpush2.bf16.msra.mxu0 0
  %297 = vmatprep.subr.bf16.mxu0 0
  %298 = vmatpush2.bf16.msra.mxu0 0
  %299 = vmatprep.subr.bf16.mxu0 0
  %300 = vmatpush2.bf16.msra.mxu0 0
  %301 = vmatprep.subr.bf16.mxu0 0
  %302 = vmatpush2.bf16.msra.mxu0 0
  %303 = vmatprep.mubr.bf16.mxu0 0
  %304 = vmatmul.mubr.bf16.gmra.mxu0 %v269
  %v305 = vpop.f32.mrf.mxu0
  %v306 = vadd.f32 0.0, %v305
  %v307 = vpop.f32.mrf.mxu0
  %v308 = vpop.f32.mrf.mxu0
  %v309 = vpop.f32.mrf.mxu0
  %310 = vdwg.mxu0
  %v311 = vadd.f32 %v263, %v306
  %v312 = vxor.u32 %v311, 2147483648
  %v313 = vmul.f32 %v312, 1.442695
  %v314 = vpow.pop %v313
  %v315 = vadd.f32 %v314, 1.0
  %v316 = vrcp.pop %v315
  %v317 = vmul.f32 1.0, %v316
  %v318 = vtanh.pop %v311
  %v319 = vmul.f32 %v317, %v157
  %321 = vrot.lane.b32.xlu0 %v318, 64
  %v322 = vpop.permute.xlu0 %321
  %v324 = vmul.f32 %v317, %v322
  %326 = vrot.lane.b32.xlu0 %v324, 32
  %v327 = vpop.permute.xlu0 %326
  %v329 = vadd.f32 %v319, %v327
  %v330 = vtanh.pop %v329
  %332 = vrot.lane.b32.xlu0 %v330, 64
  %v333 = vpop.permute.xlu0 %332
  %v335 = vmul.f32 %v317, %v333
  %337 = vrot.lane.b32.xlu0 %v335, 32
  %v338 = vpop.permute.xlu0 %337
  %s340 = scalar_lea.vmem %s4, 8
  %341 = vst.msk [vmem:[%s340] sm:$0xff] %vm91, %v338
  %s342 = scalar_lea.vmem %s44, 48
  %v343 = vld [vmem:[%s342] sm:$0xff]
  %v344 = vpack.c.bf16 %v255, %v255
  %346 = vrot.lane.b32.xlu0 %v344, 32
  %v347 = vpop.permute.xlu0 %346
  %v349 = vsel %vm91, %v347, 0
  %351 = vmatprep.subr.bf16.mxu0 0
  %352 = vmatpush1.bf16.msra.mxu0 0
  %353 = vmatprep.subr.bf16.mxu0 0
  %354 = vmatpush1.bf16.msra.mxu0 0
  %355 = vmatprep.subr.bf16.mxu0 0
  %356 = vmatpush1.bf16.msra.mxu0 0
  %357 = vmatprep.subr.bf16.mxu0 0
  %358 = vmatpush1.bf16.msra.mxu0 0
  %359 = vmatprep.subr.bf16.mxu0 0
  %360 = vmatpush1.bf16.msra.mxu0 0
  %361 = vmatprep.subr.bf16.mxu0 0
  %362 = vmatpush1.bf16.msra.mxu0 0
  %363 = vmatprep.subr.bf16.mxu0 0
  %364 = vmatpush1.bf16.msra.mxu0 %v181
  %365 = vmatprep.subr.bf16.mxu0 0
  %366 = vmatpush1.bf16.msra.mxu0 %v180
  %367 = vmatprep.subr.bf16.mxu0 0
  %368 = vmatpush2.bf16.msra.mxu0 0
  %369 = vmatprep.subr.bf16.mxu0 0
  %370 = vmatpush2.bf16.msra.mxu0 0
  %371 = vmatprep.subr.bf16.mxu0 0
  %372 = vmatpush2.bf16.msra.mxu0 0
  %373 = vmatprep.subr.bf16.mxu0 0
  %374 = vmatpush2.bf16.msra.mxu0 0
  %375 = vmatprep.subr.bf16.mxu0 0
  %376 = vmatpush2.bf16.msra.mxu0 0
  %377 = vmatprep.subr.bf16.mxu0 0
  %378 = vmatpush2.bf16.msra.mxu0 0
  %379 = vmatprep.subr.bf16.mxu0 0
  %380 = vmatpush2.bf16.msra.mxu0 0
  %381 = vmatprep.subr.bf16.mxu0 0
  %382 = vmatpush2.bf16.msra.mxu0 0
  %383 = vmatprep.mubr.bf16.mxu0 0
  %384 = vmatmul.mubr.bf16.gmra.mxu0 %v349
  %v385 = vpop.f32.mrf.mxu0
  %v386 = vadd.f32 0.0, %v385
  %v387 = vpop.f32.mrf.mxu0
  %v388 = vpop.f32.mrf.mxu0
  %v389 = vpop.f32.mrf.mxu0
  %390 = vdwg.mxu0
  %v391 = vadd.f32 %v343, %v386
  %v392 = vxor.u32 %v391, 2147483648
  %v393 = vmul.f32 %v392, 1.442695
  %v394 = vpow.pop %v393
  %v395 = vadd.f32 %v394, 1.0
  %v396 = vrcp.pop %v395
  %v397 = vmul.f32 1.0, %v396
  %v398 = vtanh.pop %v391
  %v399 = vmul.f32 %v397, %v249
  %401 = vrot.lane.b32.xlu0 %v398, 64
  %v402 = vpop.permute.xlu0 %401
  %v404 = vmul.f32 %v397, %v402
  %406 = vrot.lane.b32.xlu0 %v404, 32
  %v407 = vpop.permute.xlu0 %406
  %v409 = vadd.f32 %v399, %v407
  %v410 = vtanh.pop %v409
  %412 = vrot.lane.b32.xlu0 %v410, 64
  %v413 = vpop.permute.xlu0 %412
  %v415 = vmul.f32 %v397, %v413
  %417 = vrot.lane.b32.xlu0 %v415, 32
  %v418 = vpop.permute.xlu0 %417
  %s420 = scalar_lea.vmem %s52, 48
  %421 = vst.msk [vmem:[%s420] sm:$0xff] %vm91, %v418
  %s422 = scalar_lea.vmem %s0, 16
  %v423 = vld [vmem:[%s422] sm:$0xff]
  %v424 = vpack.c.bf16 %v335, %v335
  %426 = vrot.lane.b32.xlu0 %v424, 32
  %v427 = vpop.permute.xlu0 %426
  %v429 = vsel %vm91, %v427, 0
  %431 = vmatprep.subr.bf16.mxu0 0
  %432 = vmatpush1.bf16.msra.mxu0 0
  %433 = vmatprep.subr.bf16.mxu0 0
  %434 = vmatpush1.bf16.msra.mxu0 0
  %435 = vmatprep.subr.bf16.mxu0 0
  %436 = vmatpush1.bf16.msra.mxu0 0
  %437 = vmatprep.subr.bf16.mxu0 0
  %438 = vmatpush1.bf16.msra.mxu0 0
  %439 = vmatprep.subr.bf16.mxu0 0
  %440 = vmatpush1.bf16.msra.mxu0 0
  %441 = vmatprep.subr.bf16.mxu0 0
  %442 = vmatpush1.bf16.msra.mxu0 0
  %443 = vmatprep.subr.bf16.mxu0 0
  %444 = vmatpush1.bf16.msra.mxu0 %v88
  %445 = vmatprep.subr.bf16.mxu0 0
  %446 = vmatpush1.bf16.msra.mxu0 %v87
  %447 = vmatprep.subr.bf16.mxu0 0
  %448 = vmatpush2.bf16.msra.mxu0 0
  %449 = vmatprep.subr.bf16.mxu0 0
  %450 = vmatpush2.bf16.msra.mxu0 0
  %451 = vmatprep.subr.bf16.mxu0 0
  %452 = vmatpush2.bf16.msra.mxu0 0
  %453 = vmatprep.subr.bf16.mxu0 0
  %454 = vmatpush2.bf16.msra.mxu0 0
  %455 = vmatprep.subr.bf16.mxu0 0
  %456 = vmatpush2.bf16.msra.mxu0 0
  %457 = vmatprep.subr.bf16.mxu0 0
  %458 = vmatpush2.bf16.msra.mxu0 0
  %459 = vmatprep.subr.bf16.mxu0 0
  %460 = vmatpush2.bf16.msra.mxu0 0
  %461 = vmatprep.subr.bf16.mxu0 0
  %462 = vmatpush2.bf16.msra.mxu0 0
  %463 = vmatprep.mubr.bf16.mxu0 0
  %464 = vmatmul.mubr.bf16.gmra.mxu0 %v429
  %v465 = vpop.f32.mrf.mxu0
  %v466 = vadd.f32 0.0, %v465
  %v467 = vpop.f32.mrf.mxu0
  %v468 = vpop.f32.mrf.mxu0
  %v469 = vpop.f32.mrf.mxu0
  %470 = vdwg.mxu0
  %v471 = vadd.f32 %v423, %v466
  %v472 = vxor.u32 %v471, 2147483648
  %v473 = vmul.f32 %v472, 1.442695
  %v474 = vpow.pop %v473
  %v475 = vadd.f32 %v474, 1.0
  %v476 = vrcp.pop %v475
  %v477 = vmul.f32 1.0, %v476
  %v478 = vtanh.pop %v471
  %v479 = vmul.f32 %v477, %v329
  %481 = vrot.lane.b32.xlu0 %v478, 64
  %v482 = vpop.permute.xlu0 %481
  %v484 = vmul.f32 %v477, %v482
  %486 = vrot.lane.b32.xlu0 %v484, 32
  %v487 = vpop.permute.xlu0 %486
  %v489 = vadd.f32 %v479, %v487
  %v490 = vtanh.pop %v489
  %492 = vrot.lane.b32.xlu0 %v490, 64
  %v493 = vpop.permute.xlu0 %492
  %v495 = vmul.f32 %v477, %v493
  %497 = vrot.lane.b32.xlu0 %v495, 32
  %v498 = vpop.permute.xlu0 %497
  %s500 = scalar_lea.vmem %s4, 16
  %501 = vst.msk [vmem:[%s500] sm:$0xff] %vm91, %v498
  %s502 = scalar_lea.vmem %s44, 40
  %v503 = vld [vmem:[%s502] sm:$0xff]
  %v504 = vpack.c.bf16 %v415, %v415
  %506 = vrot.lane.b32.xlu0 %v504, 32
  %v507 = vpop.permute.xlu0 %506
  %v509 = vsel %vm91, %v507, 0
  %511 = vmatprep.subr.bf16.mxu0 0
  %512 = vmatpush1.bf16.msra.mxu0 0
  %513 = vmatprep.subr.bf16.mxu0 0
  %514 = vmatpush1.bf16.msra.mxu0 0
  %515 = vmatprep.subr.bf16.mxu0 0
  %516 = vmatpush1.bf16.msra.mxu0 0
  %517 = vmatprep.subr.bf16.mxu0 0
  %518 = vmatpush1.bf16.msra.mxu0 0
  %519 = vmatprep.subr.bf16.mxu0 0
  %520 = vmatpush1.bf16.msra.mxu0 0
  %521 = vmatprep.subr.bf16.mxu0 0
  %522 = vmatpush1.bf16.msra.mxu0 0
  %523 = vmatprep.subr.bf16.mxu0 0
  %524 = vmatpush1.bf16.msra.mxu0 %v181
  %525 = vmatprep.subr.bf16.mxu0 0
  %526 = vmatpush1.bf16.msra.mxu0 %v180
  %527 = vmatprep.subr.bf16.mxu0 0
  %528 = vmatpush2.bf16.msra.mxu0 0
  %529 = vmatprep.subr.bf16.mxu0 0
  %530 = vmatpush2.bf16.msra.mxu0 0
  %531 = vmatprep.subr.bf16.mxu0 0
  %532 = vmatpush2.bf16.msra.mxu0 0
  %533 = vmatprep.subr.bf16.mxu0 0
  %534 = vmatpush2.bf16.msra.mxu0 0
  %535 = vmatprep.subr.bf16.mxu0 0
  %536 = vmatpush2.bf16.msra.mxu0 0
  %537 = vmatprep.subr.bf16.mxu0 0
  %538 = vmatpush2.bf16.msra.mxu0 0
  %539 = vmatprep.subr.bf16.mxu0 0
  %540 = vmatpush2.bf16.msra.mxu0 0
  %541 = vmatprep.subr.bf16.mxu0 0
  %542 = vmatpush2.bf16.msra.mxu0 0
  %543 = vmatprep.mubr.bf16.mxu0 0
  %544 = vmatmul.mubr.bf16.gmra.mxu0 %v509
  %v545 = vpop.f32.mrf.mxu0
  %v546 = vadd.f32 0.0, %v545
  %v547 = vpop.f32.mrf.mxu0
  %v548 = vpop.f32.mrf.mxu0
  %v549 = vpop.f32.mrf.mxu0
  %550 = vdwg.mxu0
  %v551 = vadd.f32 %v503, %v546
  %v552 = vxor.u32 %v551, 2147483648
  %v553 = vmul.f32 %v552, 1.442695
  %v554 = vpow.pop %v553
  %v555 = vadd.f32 %v554, 1.0
  %v556 = vrcp.pop %v555
  %v557 = vmul.f32 1.0, %v556
  %v558 = vtanh.pop %v551
  %v559 = vmul.f32 %v557, %v409
  %561 = vrot.lane.b32.xlu0 %v558, 64
  %v562 = vpop.permute.xlu0 %561
  %v564 = vmul.f32 %v557, %v562
  %566 = vrot.lane.b32.xlu0 %v564, 32
  %v567 = vpop.permute.xlu0 %566
  %v569 = vadd.f32 %v559, %v567
  %v570 = vtanh.pop %v569
  %572 = vrot.lane.b32.xlu0 %v570, 64
  %v573 = vpop.permute.xlu0 %572
  %v575 = vmul.f32 %v557, %v573
  %577 = vrot.lane.b32.xlu0 %v575, 32
  %v578 = vpop.permute.xlu0 %577
  %s580 = scalar_lea.vmem %s52, 40
  %581 = vst.msk [vmem:[%s580] sm:$0xff] %vm91, %v578
  %s582 = scalar_lea.vmem %s0, 24
  %v583 = vld [vmem:[%s582] sm:$0xff]
  %v584 = vpack.c.bf16 %v495, %v495
  %586 = vrot.lane.b32.xlu0 %v584, 32
  %v587 = vpop.permute.xlu0 %586
  %v589 = vsel %vm91, %v587, 0
  %591 = vmatprep.subr.bf16.mxu0 0
  %592 = vmatpush1.bf16.msra.mxu0 0
  %593 = vmatprep.subr.bf16.mxu0 0
  %594 = vmatpush1.bf16.msra.mxu0 0
  %595 = vmatprep.subr.bf16.mxu0 0
  %596 = vmatpush1.bf16.msra.mxu0 0
  %597 = vmatprep.subr.bf16.mxu0 0
  %598 = vmatpush1.bf16.msra.mxu0 0
  %599 = vmatprep.subr.bf16.mxu0 0
  %600 = vmatpush1.bf16.msra.mxu0 0
  %601 = vmatprep.subr.bf16.mxu0 0
  %602 = vmatpush1.bf16.msra.mxu0 0
  %603 = vmatprep.subr.bf16.mxu0 0
  %604 = vmatpush1.bf16.msra.mxu0 %v88
  %605 = vmatprep.subr.bf16.mxu0 0
  %606 = vmatpush1.bf16.msra.mxu0 %v87
  %607 = vmatprep.subr.bf16.mxu0 0
  %608 = vmatpush2.bf16.msra.mxu0 0
  %609 = vmatprep.subr.bf16.mxu0 0
  %610 = vmatpush2.bf16.msra.mxu0 0
  %611 = vmatprep.subr.bf16.mxu0 0
  %612 = vmatpush2.bf16.msra.mxu0 0
  %613 = vmatprep.subr.bf16.mxu0 0
  %614 = vmatpush2.bf16.msra.mxu0 0
  %615 = vmatprep.subr.bf16.mxu0 0
  %616 = vmatpush2.bf16.msra.mxu0 0
  %617 = vmatprep.subr.bf16.mxu0 0
  %618 = vmatpush2.bf16.msra.mxu0 0
  %619 = vmatprep.subr.bf16.mxu0 0
  %620 = vmatpush2.bf16.msra.mxu0 0
  %621 = vmatprep.subr.bf16.mxu0 0
  %622 = vmatpush2.bf16.msra.mxu0 0
  %623 = vmatprep.mubr.bf16.mxu0 0
  %624 = vmatmul.mubr.bf16.gmra.mxu0 %v589
  %v625 = vpop.f32.mrf.mxu0
  %v626 = vadd.f32 0.0, %v625
  %v627 = vpop.f32.mrf.mxu0
  %v628 = vpop.f32.mrf.mxu0
  %v629 = vpop.f32.mrf.mxu0
  %630 = vdwg.mxu0
  %v631 = vadd.f32 %v583, %v626
  %v632 = vxor.u32 %v631, 2147483648
  %v633 = vmul.f32 %v632, 1.442695
  %v634 = vpow.pop %v633
  %v635 = vadd.f32 %v634, 1.0
  %v636 = vrcp.pop %v635
  %v637 = vmul.f32 1.0, %v636
  %v638 = vtanh.pop %v631
  %v639 = vmul.f32 %v637, %v489
  %641 = vrot.lane.b32.xlu0 %v638, 64
  %v642 = vpop.permute.xlu0 %641
  %v644 = vmul.f32 %v637, %v642
  %646 = vrot.lane.b32.xlu0 %v644, 32
  %v647 = vpop.permute.xlu0 %646
  %v649 = vadd.f32 %v639, %v647
  %v650 = vtanh.pop %v649
  %652 = vrot.lane.b32.xlu0 %v650, 64
  %v653 = vpop.permute.xlu0 %652
  %v655 = vmul.f32 %v637, %v653
  %657 = vrot.lane.b32.xlu0 %v655, 32
  %v658 = vpop.permute.xlu0 %657
  %s660 = scalar_lea.vmem %s4, 24
  %661 = vst.msk [vmem:[%s660] sm:$0xff] %vm91, %v658
  %s662 = scalar_lea.vmem %s44, 32
  %v663 = vld [vmem:[%s662] sm:$0xff]
  %v664 = vpack.c.bf16 %v575, %v575
  %666 = vrot.lane.b32.xlu0 %v664, 32
  %v667 = vpop.permute.xlu0 %666
  %v669 = vsel %vm91, %v667, 0
  %671 = vmatprep.subr.bf16.mxu0 0
  %672 = vmatpush1.bf16.msra.mxu0 0
  %673 = vmatprep.subr.bf16.mxu0 0
  %674 = vmatpush1.bf16.msra.mxu0 0
  %675 = vmatprep.subr.bf16.mxu0 0
  %676 = vmatpush1.bf16.msra.mxu0 0
  %677 = vmatprep.subr.bf16.mxu0 0
  %678 = vmatpush1.bf16.msra.mxu0 0
  %679 = vmatprep.subr.bf16.mxu0 0
  %680 = vmatpush1.bf16.msra.mxu0 0
  %681 = vmatprep.subr.bf16.mxu0 0
  %682 = vmatpush1.bf16.msra.mxu0 0
  %683 = vmatprep.subr.bf16.mxu0 0
  %684 = vmatpush1.bf16.msra.mxu0 %v181
  %685 = vmatprep.subr.bf16.mxu0 0
  %686 = vmatpush1.bf16.msra.mxu0 %v180
  %687 = vmatprep.subr.bf16.mxu0 0
  %688 = vmatpush2.bf16.msra.mxu0 0
  %689 = vmatprep.subr.bf16.mxu0 0
  %690 = vmatpush2.bf16.msra.mxu0 0
  %691 = vmatprep.subr.bf16.mxu0 0
  %692 = vmatpush2.bf16.msra.mxu0 0
  %693 = vmatprep.subr.bf16.mxu0 0
  %694 = vmatpush2.bf16.msra.mxu0 0
  %695 = vmatprep.subr.bf16.mxu0 0
  %696 = vmatpush2.bf16.msra.mxu0 0
  %697 = vmatprep.subr.bf16.mxu0 0
  %698 = vmatpush2.bf16.msra.mxu0 0
  %699 = vmatprep.subr.bf16.mxu0 0
  %700 = vmatpush2.bf16.msra.mxu0 0
  %701 = vmatprep.subr.bf16.mxu0 0
  %702 = vmatpush2.bf16.msra.mxu0 0
  %703 = vmatprep.mubr.bf16.mxu0 0
  %704 = vmatmul.mubr.bf16.gmra.mxu0 %v669
  %v705 = vpop.f32.mrf.mxu0
  %v706 = vadd.f32 0.0, %v705
  %v707 = vpop.f32.mrf.mxu0
  %v708 = vpop.f32.mrf.mxu0
  %v709 = vpop.f32.mrf.mxu0
  %710 = vdwg.mxu0
  %v711 = vadd.f32 %v663, %v706
  %v712 = vxor.u32 %v711, 2147483648
  %v713 = vmul.f32 %v712, 1.442695
  %v714 = vpow.pop %v713
  %v715 = vadd.f32 %v714, 1.0
  %v716 = vrcp.pop %v715
  %v717 = vmul.f32 1.0, %v716
  %v718 = vtanh.pop %v711
  %v719 = vmul.f32 %v717, %v569
  %721 = vrot.lane.b32.xlu0 %v718, 64
  %v722 = vpop.permute.xlu0 %721
  %v724 = vmul.f32 %v717, %v722
  %726 = vrot.lane.b32.xlu0 %v724, 32
  %v727 = vpop.permute.xlu0 %726
  %v729 = vadd.f32 %v719, %v727
  %v730 = vtanh.pop %v729
  %732 = vrot.lane.b32.xlu0 %v730, 64
  %v733 = vpop.permute.xlu0 %732
  %v735 = vmul.f32 %v717, %v733
  %737 = vrot.lane.b32.xlu0 %v735, 32
  %v738 = vpop.permute.xlu0 %737
  %s740 = scalar_lea.vmem %s52, 32
  %741 = vst.msk [vmem:[%s740] sm:$0xff] %vm91, %v738
  %s742 = scalar_lea.vmem %s0, 32
  %v743 = vld [vmem:[%s742] sm:$0xff]
  %v744 = vpack.c.bf16 %v655, %v655
  %746 = vrot.lane.b32.xlu0 %v744, 32
  %v747 = vpop.permute.xlu0 %746
  %v749 = vsel %vm91, %v747, 0
  %751 = vmatprep.subr.bf16.mxu0 0
  %752 = vmatpush1.bf16.msra.mxu0 0
  %753 = vmatprep.subr.bf16.mxu0 0
  %754 = vmatpush1.bf16.msra.mxu0 0
  %755 = vmatprep.subr.bf16.mxu0 0
  %756 = vmatpush1.bf16.msra.mxu0 0
  %757 = vmatprep.subr.bf16.mxu0 0
  %758 = vmatpush1.bf16.msra.mxu0 0
  %759 = vmatprep.subr.bf16.mxu0 0
  %760 = vmatpush1.bf16.msra.mxu0 0
  %761 = vmatprep.subr.bf16.mxu0 0
  %762 = vmatpush1.bf16.msra.mxu0 0
  %763 = vmatprep.subr.bf16.mxu0 0
  %764 = vmatpush1.bf16.msra.mxu0 %v88
  %765 = vmatprep.subr.bf16.mxu0 0
  %766 = vmatpush1.bf16.msra.mxu0 %v87
  %767 = vmatprep.subr.bf16.mxu0 0
  %768 = vmatpush2.bf16.msra.mxu0 0
  %769 = vmatprep.subr.bf16.mxu0 0
  %770 = vmatpush2.bf16.msra.mxu0 0
  %771 = vmatprep.subr.bf16.mxu0 0
  %772 = vmatpush2.bf16.msra.mxu0 0
  %773 = vmatprep.subr.bf16.mxu0 0
  %774 = vmatpush2.bf16.msra.mxu0 0
  %775 = vmatprep.subr.bf16.mxu0 0
  %776 = vmatpush2.bf16.msra.mxu0 0
  %777 = vmatprep.subr.bf16.mxu0 0
  %778 = vmatpush2.bf16.msra.mxu0 0
  %779 = vmatprep.subr.bf16.mxu0 0
  %780 = vmatpush2.bf16.msra.mxu0 0
  %781 = vmatprep.subr.bf16.mxu0 0
  %782 = vmatpush2.bf16.msra.mxu0 0
  %783 = vmatprep.mubr.bf16.mxu0 0
  %784 = vmatmul.mubr.bf16.gmra.mxu0 %v749
  %v785 = vpop.f32.mrf.mxu0
  %v786 = vadd.f32 0.0, %v785
  %v787 = vpop.f32.mrf.mxu0
  %v788 = vpop.f32.mrf.mxu0
  %v789 = vpop.f32.mrf.mxu0
  %790 = vdwg.mxu0
  %v791 = vadd.f32 %v743, %v786
  %v792 = vxor.u32 %v791, 2147483648
  %v793 = vmul.f32 %v792, 1.442695
  %v794 = vpow.pop %v793
  %v795 = vadd.f32 %v794, 1.0
  %v796 = vrcp.pop %v795
  %v797 = vmul.f32 1.0, %v796
  %v798 = vtanh.pop %v791
  %v799 = vmul.f32 %v797, %v649
  %801 = vrot.lane.b32.xlu0 %v798, 64
  %v802 = vpop.permute.xlu0 %801
  %v804 = vmul.f32 %v797, %v802
  %806 = vrot.lane.b32.xlu0 %v804, 32
  %v807 = vpop.permute.xlu0 %806
  %v809 = vadd.f32 %v799, %v807
  %v810 = vtanh.pop %v809
  %812 = vrot.lane.b32.xlu0 %v810, 64
  %v813 = vpop.permute.xlu0 %812
  %v815 = vmul.f32 %v797, %v813
  %817 = vrot.lane.b32.xlu0 %v815, 32
  %v818 = vpop.permute.xlu0 %817
  %s820 = scalar_lea.vmem %s4, 32
  %821 = vst.msk [vmem:[%s820] sm:$0xff] %vm91, %v818
  %s822 = scalar_lea.vmem %s44, 24
  %v823 = vld [vmem:[%s822] sm:$0xff]
  %v824 = vpack.c.bf16 %v735, %v735
  %826 = vrot.lane.b32.xlu0 %v824, 32
  %v827 = vpop.permute.xlu0 %826
  %v829 = vsel %vm91, %v827, 0
  %831 = vmatprep.subr.bf16.mxu0 0
  %832 = vmatpush1.bf16.msra.mxu0 0
  %833 = vmatprep.subr.bf16.mxu0 0
  %834 = vmatpush1.bf16.msra.mxu0 0
  %835 = vmatprep.subr.bf16.mxu0 0
  %836 = vmatpush1.bf16.msra.mxu0 0
  %837 = vmatprep.subr.bf16.mxu0 0
  %838 = vmatpush1.bf16.msra.mxu0 0
  %839 = vmatprep.subr.bf16.mxu0 0
  %840 = vmatpush1.bf16.msra.mxu0 0
  %841 = vmatprep.subr.bf16.mxu0 0
  %842 = vmatpush1.bf16.msra.mxu0 0
  %843 = vmatprep.subr.bf16.mxu0 0
  %844 = vmatpush1.bf16.msra.mxu0 %v181
  %845 = vmatprep.subr.bf16.mxu0 0
  %846 = vmatpush1.bf16.msra.mxu0 %v180
  %847 = vmatprep.subr.bf16.mxu0 0
  %848 = vmatpush2.bf16.msra.mxu0 0
  %849 = vmatprep.subr.bf16.mxu0 0
  %850 = vmatpush2.bf16.msra.mxu0 0
  %851 = vmatprep.subr.bf16.mxu0 0
  %852 = vmatpush2.bf16.msra.mxu0 0
  %853 = vmatprep.subr.bf16.mxu0 0
  %854 = vmatpush2.bf16.msra.mxu0 0
  %855 = vmatprep.subr.bf16.mxu0 0
  %856 = vmatpush2.bf16.msra.mxu0 0
  %857 = vmatprep.subr.bf16.mxu0 0
  %858 = vmatpush2.bf16.msra.mxu0 0
  %859 = vmatprep.subr.bf16.mxu0 0
  %860 = vmatpush2.bf16.msra.mxu0 0
  %861 = vmatprep.subr.bf16.mxu0 0
  %862 = vmatpush2.bf16.msra.mxu0 0
  %863 = vmatprep.mubr.bf16.mxu0 0
  %864 = vmatmul.mubr.bf16.gmra.mxu0 %v829
  %v865 = vpop.f32.mrf.mxu0
  %v866 = vadd.f32 0.0, %v865
  %v867 = vpop.f32.mrf.mxu0
  %v868 = vpop.f32.mrf.mxu0
  %v869 = vpop.f32.mrf.mxu0
  %870 = vdwg.mxu0
  %v871 = vadd.f32 %v823, %v866
  %v872 = vxor.u32 %v871, 2147483648
  %v873 = vmul.f32 %v872, 1.442695
  %v874 = vpow.pop %v873
  %v875 = vadd.f32 %v874, 1.0
  %v876 = vrcp.pop %v875
  %v877 = vmul.f32 1.0, %v876
  %v878 = vtanh.pop %v871
  %v879 = vmul.f32 %v877, %v729
  %881 = vrot.lane.b32.xlu0 %v878, 64
  %v882 = vpop.permute.xlu0 %881
  %v884 = vmul.f32 %v877, %v882
  %886 = vrot.lane.b32.xlu0 %v884, 32
  %v887 = vpop.permute.xlu0 %886
  %v889 = vadd.f32 %v879, %v887
  %v890 = vtanh.pop %v889
  %892 = vrot.lane.b32.xlu0 %v890, 64
  %v893 = vpop.permute.xlu0 %892
  %v895 = vmul.f32 %v877, %v893
  %897 = vrot.lane.b32.xlu0 %v895, 32
  %v898 = vpop.permute.xlu0 %897
  %s900 = scalar_lea.vmem %s52, 24
  %901 = vst.msk [vmem:[%s900] sm:$0xff] %vm91, %v898
  %s902 = scalar_lea.vmem %s0, 40
  %v903 = vld [vmem:[%s902] sm:$0xff]
  %v904 = vpack.c.bf16 %v815, %v815
  %906 = vrot.lane.b32.xlu0 %v904, 32
  %v907 = vpop.permute.xlu0 %906
  %v909 = vsel %vm91, %v907, 0
  %911 = vmatprep.subr.bf16.mxu0 0
  %912 = vmatpush1.bf16.msra.mxu0 0
  %913 = vmatprep.subr.bf16.mxu0 0
  %914 = vmatpush1.bf16.msra.mxu0 0
  %915 = vmatprep.subr.bf16.mxu0 0
  %916 = vmatpush1.bf16.msra.mxu0 0
  %917 = vmatprep.subr.bf16.mxu0 0
  %918 = vmatpush1.bf16.msra.mxu0 0
  %919 = vmatprep.subr.bf16.mxu0 0
  %920 = vmatpush1.bf16.msra.mxu0 0
  %921 = vmatprep.subr.bf16.mxu0 0
  %922 = vmatpush1.bf16.msra.mxu0 0
  %923 = vmatprep.subr.bf16.mxu0 0
  %924 = vmatpush1.bf16.msra.mxu0 %v88
  %925 = vmatprep.subr.bf16.mxu0 0
  %926 = vmatpush1.bf16.msra.mxu0 %v87
  %927 = vmatprep.subr.bf16.mxu0 0
  %928 = vmatpush2.bf16.msra.mxu0 0
  %929 = vmatprep.subr.bf16.mxu0 0
  %930 = vmatpush2.bf16.msra.mxu0 0
  %931 = vmatprep.subr.bf16.mxu0 0
  %932 = vmatpush2.bf16.msra.mxu0 0
  %933 = vmatprep.subr.bf16.mxu0 0
  %934 = vmatpush2.bf16.msra.mxu0 0
  %935 = vmatprep.subr.bf16.mxu0 0
  %936 = vmatpush2.bf16.msra.mxu0 0
  %937 = vmatprep.subr.bf16.mxu0 0
  %938 = vmatpush2.bf16.msra.mxu0 0
  %939 = vmatprep.subr.bf16.mxu0 0
  %940 = vmatpush2.bf16.msra.mxu0 0
  %941 = vmatprep.subr.bf16.mxu0 0
  %942 = vmatpush2.bf16.msra.mxu0 0
  %943 = vmatprep.mubr.bf16.mxu0 0
  %944 = vmatmul.mubr.bf16.gmra.mxu0 %v909
  %v945 = vpop.f32.mrf.mxu0
  %v946 = vadd.f32 0.0, %v945
  %v947 = vpop.f32.mrf.mxu0
  %v948 = vpop.f32.mrf.mxu0
  %v949 = vpop.f32.mrf.mxu0
  %950 = vdwg.mxu0
  %v951 = vadd.f32 %v903, %v946
  %v952 = vxor.u32 %v951, 2147483648
  %v953 = vmul.f32 %v952, 1.442695
  %v954 = vpow.pop %v953
  %v955 = vadd.f32 %v954, 1.0
  %v956 = vrcp.pop %v955
  %v957 = vmul.f32 1.0, %v956
  %v958 = vtanh.pop %v951
  %v959 = vmul.f32 %v957, %v809
  %961 = vrot.lane.b32.xlu0 %v958, 64
  %v962 = vpop.permute.xlu0 %961
  %v964 = vmul.f32 %v957, %v962
  %966 = vrot.lane.b32.xlu0 %v964, 32
  %v967 = vpop.permute.xlu0 %966
  %v969 = vadd.f32 %v959, %v967
  %v970 = vtanh.pop %v969
  %972 = vrot.lane.b32.xlu0 %v970, 64
  %v973 = vpop.permute.xlu0 %972
  %v975 = vmul.f32 %v957, %v973
  %977 = vrot.lane.b32.xlu0 %v975, 32
  %v978 = vpop.permute.xlu0 %977
  %s980 = scalar_lea.vmem %s4, 40
  %981 = vst.msk [vmem:[%s980] sm:$0xff] %vm91, %v978
  %s982 = scalar_lea.vmem %s44, 16
  %v983 = vld [vmem:[%s982] sm:$0xff]
  %v984 = vpack.c.bf16 %v895, %v895
  %986 = vrot.lane.b32.xlu0 %v984, 32
  %v987 = vpop.permute.xlu0 %986
  %v989 = vsel %vm91, %v987, 0
  %991 = vmatprep.subr.bf16.mxu0 0
  %992 = vmatpush1.bf16.msra.mxu0 0
  %993 = vmatprep.subr.bf16.mxu0 0
  %994 = vmatpush1.bf16.msra.mxu0 0
  %995 = vmatprep.subr.bf16.mxu0 0
  %996 = vmatpush1.bf16.msra.mxu0 0
  %997 = vmatprep.subr.bf16.mxu0 0
  %998 = vmatpush1.bf16.msra.mxu0 0
  %999 = vmatprep.subr.bf16.mxu0 0
  %1000 = vmatpush1.bf16.msra.mxu0 0
  %1001 = vmatprep.subr.bf16.mxu0 0
  %1002 = vmatpush1.bf16.msra.mxu0 0
  %1003 = vmatprep.subr.bf16.mxu0 0
  %1004 = vmatpush1.bf16.msra.mxu0 %v181
  %1005 = vmatprep.subr.bf16.mxu0 0
  %1006 = vmatpush1.bf16.msra.mxu0 %v180
  %1007 = vmatprep.subr.bf16.mxu0 0
  %1008 = vmatpush2.bf16.msra.mxu0 0
  %1009 = vmatprep.subr.bf16.mxu0 0
  %1010 = vmatpush2.bf16.msra.mxu0 0
  %1011 = vmatprep.subr.bf16.mxu0 0
  %1012 = vmatpush2.bf16.msra.mxu0 0
  %1013 = vmatprep.subr.bf16.mxu0 0
  %1014 = vmatpush2.bf16.msra.mxu0 0
  %1015 = vmatprep.subr.bf16.mxu0 0
  %1016 = vmatpush2.bf16.msra.mxu0 0
  %1017 = vmatprep.subr.bf16.mxu0 0
  %1018 = vmatpush2.bf16.msra.mxu0 0
  %1019 = vmatprep.subr.bf16.mxu0 0
  %1020 = vmatpush2.bf16.msra.mxu0 0
  %1021 = vmatprep.subr.bf16.mxu0 0
  %1022 = vmatpush2.bf16.msra.mxu0 0
  %1023 = vmatprep.mubr.bf16.mxu0 0
  %1024 = vmatmul.mubr.bf16.gmra.mxu0 %v989
  %v1025 = vpop.f32.mrf.mxu0
  %v1026 = vadd.f32 0.0, %v1025
  %v1027 = vpop.f32.mrf.mxu0
  %v1028 = vpop.f32.mrf.mxu0
  %v1029 = vpop.f32.mrf.mxu0
  %1030 = vdwg.mxu0
  %v1031 = vadd.f32 %v983, %v1026
  %v1032 = vxor.u32 %v1031, 2147483648
  %v1033 = vmul.f32 %v1032, 1.442695
  %v1034 = vpow.pop %v1033
  %v1035 = vadd.f32 %v1034, 1.0
  %v1036 = vrcp.pop %v1035
  %v1037 = vmul.f32 1.0, %v1036
  %v1038 = vtanh.pop %v1031
  %v1039 = vmul.f32 %v1037, %v889
  %1041 = vrot.lane.b32.xlu0 %v1038, 64
  %v1042 = vpop.permute.xlu0 %1041
  %v1044 = vmul.f32 %v1037, %v1042
  %1046 = vrot.lane.b32.xlu0 %v1044, 32
  %v1047 = vpop.permute.xlu0 %1046
  %v1049 = vadd.f32 %v1039, %v1047
  %v1050 = vtanh.pop %v1049
  %1052 = vrot.lane.b32.xlu0 %v1050, 64
  %v1053 = vpop.permute.xlu0 %1052
  %v1055 = vmul.f32 %v1037, %v1053
  %1057 = vrot.lane.b32.xlu0 %v1055, 32
  %v1058 = vpop.permute.xlu0 %1057
  %s1060 = scalar_lea.vmem %s52, 16
  %1061 = vst.msk [vmem:[%s1060] sm:$0xff] %vm91, %v1058
  %s1062 = scalar_lea.vmem %s0, 48
  %v1063 = vld [vmem:[%s1062] sm:$0xff]
  %v1064 = vpack.c.bf16 %v975, %v975
  %1066 = vrot.lane.b32.xlu0 %v1064, 32
  %v1067 = vpop.permute.xlu0 %1066
  %v1069 = vsel %vm91, %v1067, 0
  %1071 = vmatprep.subr.bf16.mxu0 0
  %1072 = vmatpush1.bf16.msra.mxu0 0
  %1073 = vmatprep.subr.bf16.mxu0 0
  %1074 = vmatpush1.bf16.msra.mxu0 0
  %1075 = vmatprep.subr.bf16.mxu0 0
  %1076 = vmatpush1.bf16.msra.mxu0 0
  %1077 = vmatprep.subr.bf16.mxu0 0
  %1078 = vmatpush1.bf16.msra.mxu0 0
  %1079 = vmatprep.subr.bf16.mxu0 0
  %1080 = vmatpush1.bf16.msra.mxu0 0
  %1081 = vmatprep.subr.bf16.mxu0 0
  %1082 = vmatpush1.bf16.msra.mxu0 0
  %1083 = vmatprep.subr.bf16.mxu0 0
  %1084 = vmatpush1.bf16.msra.mxu0 %v88
  %1085 = vmatprep.subr.bf16.mxu0 0
  %1086 = vmatpush1.bf16.msra.mxu0 %v87
  %1087 = vmatprep.subr.bf16.mxu0 0
  %1088 = vmatpush2.bf16.msra.mxu0 0
  %1089 = vmatprep.subr.bf16.mxu0 0
  %1090 = vmatpush2.bf16.msra.mxu0 0
  %1091 = vmatprep.subr.bf16.mxu0 0
  %1092 = vmatpush2.bf16.msra.mxu0 0
  %1093 = vmatprep.subr.bf16.mxu0 0
  %1094 = vmatpush2.bf16.msra.mxu0 0
  %1095 = vmatprep.subr.bf16.mxu0 0
  %1096 = vmatpush2.bf16.msra.mxu0 0
  %1097 = vmatprep.subr.bf16.mxu0 0
  %1098 = vmatpush2.bf16.msra.mxu0 0
  %1099 = vmatprep.subr.bf16.mxu0 0
  %1100 = vmatpush2.bf16.msra.mxu0 0
  %1101 = vmatprep.subr.bf16.mxu0 0
  %1102 = vmatpush2.bf16.msra.mxu0 0
  %1103 = vmatprep.mubr.bf16.mxu0 0
  %1104 = vmatmul.mubr.bf16.gmra.mxu0 %v1069
  %v1105 = vpop.f32.mrf.mxu0
  %v1106 = vadd.f32 0.0, %v1105
  %v1107 = vpop.f32.mrf.mxu0
  %v1108 = vpop.f32.mrf.mxu0
  %v1109 = vpop.f32.mrf.mxu0
  %1110 = vdwg.mxu0
  %v1111 = vadd.f32 %v1063, %v1106
  %v1112 = vxor.u32 %v1111, 2147483648
  %v1113 = vmul.f32 %v1112, 1.442695
  %v1114 = vpow.pop %v1113
  %v1115 = vadd.f32 %v1114, 1.0
  %v1116 = vrcp.pop %v1115
  %v1117 = vmul.f32 1.0, %v1116
  %v1118 = vtanh.pop %v1111
  %v1119 = vmul.f32 %v1117, %v969
  %1121 = vrot.lane.b32.xlu0 %v1118, 64
  %v1122 = vpop.permute.xlu0 %1121
  %v1124 = vmul.f32 %v1117, %v1122
  %1126 = vrot.lane.b32.xlu0 %v1124, 32
  %v1127 = vpop.permute.xlu0 %1126
  %v1129 = vadd.f32 %v1119, %v1127
  %v1130 = vtanh.pop %v1129
  %1132 = vrot.lane.b32.xlu0 %v1130, 64
  %v1133 = vpop.permute.xlu0 %1132
  %v1135 = vmul.f32 %v1117, %v1133
  %1137 = vrot.lane.b32.xlu0 %v1135, 32
  %v1138 = vpop.permute.xlu0 %1137
  %s1140 = scalar_lea.vmem %s4, 48
  %1141 = vst.msk [vmem:[%s1140] sm:$0xff] %vm91, %v1138
  %s1142 = scalar_lea.vmem %s44, 8
  %v1143 = vld [vmem:[%s1142] sm:$0xff]
  %v1144 = vpack.c.bf16 %v1055, %v1055
  %1146 = vrot.lane.b32.xlu0 %v1144, 32
  %v1147 = vpop.permute.xlu0 %1146
  %v1149 = vsel %vm91, %v1147, 0
  %1151 = vmatprep.subr.bf16.mxu0 0
  %1152 = vmatpush1.bf16.msra.mxu0 0
  %1153 = vmatprep.subr.bf16.mxu0 0
  %1154 = vmatpush1.bf16.msra.mxu0 0
  %1155 = vmatprep.subr.bf16.mxu0 0
  %1156 = vmatpush1.bf16.msra.mxu0 0
  %1157 = vmatprep.subr.bf16.mxu0 0
  %1158 = vmatpush1.bf16.msra.mxu0 0
  %1159 = vmatprep.subr.bf16.mxu0 0
  %1160 = vmatpush1.bf16.msra.mxu0 0
  %1161 = vmatprep.subr.bf16.mxu0 0
  %1162 = vmatpush1.bf16.msra.mxu0 0
  %1163 = vmatprep.subr.bf16.mxu0 0
  %1164 = vmatpush1.bf16.msra.mxu0 %v181
  %1165 = vmatprep.subr.bf16.mxu0 0
  %1166 = vmatpush1.bf16.msra.mxu0 %v180
  %1167 = vmatprep.subr.bf16.mxu0 0
  %1168 = vmatpush2.bf16.msra.mxu0 0
  %1169 = vmatprep.subr.bf16.mxu0 0
  %1170 = vmatpush2.bf16.msra.mxu0 0
  %1171 = vmatprep.subr.bf16.mxu0 0
  %1172 = vmatpush2.bf16.msra.mxu0 0
  %1173 = vmatprep.subr.bf16.mxu0 0
  %1174 = vmatpush2.bf16.msra.mxu0 0
  %1175 = vmatprep.subr.bf16.mxu0 0
  %1176 = vmatpush2.bf16.msra.mxu0 0
  %1177 = vmatprep.subr.bf16.mxu0 0
  %1178 = vmatpush2.bf16.msra.mxu0 0
  %1179 = vmatprep.subr.bf16.mxu0 0
  %1180 = vmatpush2.bf16.msra.mxu0 0
  %1181 = vmatprep.subr.bf16.mxu0 0
  %1182 = vmatpush2.bf16.msra.mxu0 0
  %1183 = vmatprep.mubr.bf16.mxu0 0
  %1184 = vmatmul.mubr.bf16.gmra.mxu0 %v1149
  %v1185 = vpop.f32.mrf.mxu0
  %v1186 = vadd.f32 0.0, %v1185
  %v1187 = vpop.f32.mrf.mxu0
  %v1188 = vpop.f32.mrf.mxu0
  %v1189 = vpop.f32.mrf.mxu0
  %1190 = vdwg.mxu0
  %v1191 = vadd.f32 %v1143, %v1186
  %v1192 = vxor.u32 %v1191, 2147483648
  %v1193 = vmul.f32 %v1192, 1.442695
  %v1194 = vpow.pop %v1193
  %v1195 = vadd.f32 %v1194, 1.0
  %v1196 = vrcp.pop %v1195
  %v1197 = vmul.f32 1.0, %v1196
  %v1198 = vtanh.pop %v1191
  %v1199 = vmul.f32 %v1197, %v1049
  %1201 = vrot.lane.b32.xlu0 %v1198, 64
  %v1202 = vpop.permute.xlu0 %1201
  %v1204 = vmul.f32 %v1197, %v1202
  %1206 = vrot.lane.b32.xlu0 %v1204, 32
  %v1207 = vpop.permute.xlu0 %1206
  %v1209 = vadd.f32 %v1199, %v1207
  %v1210 = vtanh.pop %v1209
  %1212 = vrot.lane.b32.xlu0 %v1210, 64
  %v1213 = vpop.permute.xlu0 %1212
  %v1215 = vmul.f32 %v1197, %v1213
  %1217 = vrot.lane.b32.xlu0 %v1215, 32
  %v1218 = vpop.permute.xlu0 %1217
  %s1220 = scalar_lea.vmem %s52, 8
  %1221 = vst.msk [vmem:[%s1220] sm:$0xff] %vm91, %v1218
  %s1222 = scalar_lea.vmem %s0, 56
  %v1223 = vld [vmem:[%s1222] sm:$0xff]
  %v1224 = vpack.c.bf16 %v1135, %v1135
  %1226 = vrot.lane.b32.xlu0 %v1224, 32
  %v1227 = vpop.permute.xlu0 %1226
  %v1229 = vsel %vm91, %v1227, 0
  %1231 = vmatprep.subr.bf16.mxu0 0
  %1232 = vmatpush1.bf16.msra.mxu0 0
  %1233 = vmatprep.subr.bf16.mxu0 0
  %1234 = vmatpush1.bf16.msra.mxu0 0
  %1235 = vmatprep.subr.bf16.mxu0 0
  %1236 = vmatpush1.bf16.msra.mxu0 0
  %1237 = vmatprep.subr.bf16.mxu0 0
  %1238 = vmatpush1.bf16.msra.mxu0 0
  %1239 = vmatprep.subr.bf16.mxu0 0
  %1240 = vmatpush1.bf16.msra.mxu0 0
  %1241 = vmatprep.subr.bf16.mxu0 0
  %1242 = vmatpush1.bf16.msra.mxu0 0
  %1243 = vmatprep.subr.bf16.mxu0 0
  %1244 = vmatpush1.bf16.msra.mxu0 %v88
  %1245 = vmatprep.subr.bf16.mxu0 0
  %1246 = vmatpush1.bf16.msra.mxu0 %v87
  %1247 = vmatprep.subr.bf16.mxu0 0
  %1248 = vmatpush2.bf16.msra.mxu0 0
  %1249 = vmatprep.subr.bf16.mxu0 0
  %1250 = vmatpush2.bf16.msra.mxu0 0
  %1251 = vmatprep.subr.bf16.mxu0 0
  %1252 = vmatpush2.bf16.msra.mxu0 0
  %1253 = vmatprep.subr.bf16.mxu0 0
  %1254 = vmatpush2.bf16.msra.mxu0 0
  %1255 = vmatprep.subr.bf16.mxu0 0
  %1256 = vmatpush2.bf16.msra.mxu0 0
  %1257 = vmatprep.subr.bf16.mxu0 0
  %1258 = vmatpush2.bf16.msra.mxu0 0
  %1259 = vmatprep.subr.bf16.mxu0 0
  %1260 = vmatpush2.bf16.msra.mxu0 0
  %1261 = vmatprep.subr.bf16.mxu0 0
  %1262 = vmatpush2.bf16.msra.mxu0 0
  %1263 = vmatprep.mubr.bf16.mxu0 0
  %1264 = vmatmul.mubr.bf16.gmra.mxu0 %v1229
  %v1265 = vpop.f32.mrf.mxu0
  %v1266 = vadd.f32 0.0, %v1265
  %v1267 = vpop.f32.mrf.mxu0
  %v1268 = vpop.f32.mrf.mxu0
  %v1269 = vpop.f32.mrf.mxu0
  %1270 = vdwg.mxu0
  %v1271 = vadd.f32 %v1223, %v1266
  %v1272 = vxor.u32 %v1271, 2147483648
  %v1273 = vmul.f32 %v1272, 1.442695
  %v1274 = vpow.pop %v1273
  %v1275 = vadd.f32 %v1274, 1.0
  %v1276 = vrcp.pop %v1275
  %v1277 = vmul.f32 1.0, %v1276
  %v1278 = vtanh.pop %v1271
  %v1279 = vmul.f32 %v1277, %v1129
  %1281 = vrot.lane.b32.xlu0 %v1278, 64
  %v1282 = vpop.permute.xlu0 %1281
  %v1284 = vmul.f32 %v1277, %v1282
  %1286 = vrot.lane.b32.xlu0 %v1284, 32
  %v1287 = vpop.permute.xlu0 %1286
  %v1289 = vadd.f32 %v1279, %v1287
  %v1290 = vtanh.pop %v1289
  %1292 = vrot.lane.b32.xlu0 %v1290, 64
  %v1293 = vpop.permute.xlu0 %1292
  %v1295 = vmul.f32 %v1277, %v1293
  %1297 = vrot.lane.b32.xlu0 %v1295, 32
  %v1298 = vpop.permute.xlu0 %1297
  %s1300 = scalar_lea.vmem %s4, 56
  %1301 = vst.msk [vmem:[%s1300] sm:$0xff] %vm91, %v1298
  %v1302 = vld [vmem:[%s44] sm:$0xff]
  %v1303 = vpack.c.bf16 %v1215, %v1215
  %1305 = vrot.lane.b32.xlu0 %v1303, 32
  %v1306 = vpop.permute.xlu0 %1305
  %v1308 = vsel %vm91, %v1306, 0
  %1310 = vmatprep.subr.bf16.mxu0 0
  %1311 = vmatpush1.bf16.msra.mxu0 0
  %1312 = vmatprep.subr.bf16.mxu0 0
  %1313 = vmatpush1.bf16.msra.mxu0 0
  %1314 = vmatprep.subr.bf16.mxu0 0
  %1315 = vmatpush1.bf16.msra.mxu0 0
  %1316 = vmatprep.subr.bf16.mxu0 0
  %1317 = vmatpush1.bf16.msra.mxu0 0
  %1318 = vmatprep.subr.bf16.mxu0 0
  %1319 = vmatpush1.bf16.msra.mxu0 0
  %1320 = vmatprep.subr.bf16.mxu0 0
  %1321 = vmatpush1.bf16.msra.mxu0 0
  %1322 = vmatprep.subr.bf16.mxu0 0
  %1323 = vmatpush1.bf16.msra.mxu0 %v181
  %1324 = vmatprep.subr.bf16.mxu0 0
  %1325 = vmatpush1.bf16.msra.mxu0 %v180
  %1326 = vmatprep.subr.bf16.mxu0 0
  %1327 = vmatpush2.bf16.msra.mxu0 0
  %1328 = vmatprep.subr.bf16.mxu0 0
  %1329 = vmatpush2.bf16.msra.mxu0 0
  %1330 = vmatprep.subr.bf16.mxu0 0
  %1331 = vmatpush2.bf16.msra.mxu0 0
  %1332 = vmatprep.subr.bf16.mxu0 0
  %1333 = vmatpush2.bf16.msra.mxu0 0
  %1334 = vmatprep.subr.bf16.mxu0 0
  %1335 = vmatpush2.bf16.msra.mxu0 0
  %1336 = vmatprep.subr.bf16.mxu0 0
  %1337 = vmatpush2.bf16.msra.mxu0 0
  %1338 = vmatprep.subr.bf16.mxu0 0
  %1339 = vmatpush2.bf16.msra.mxu0 0
  %1340 = vmatprep.subr.bf16.mxu0 0
  %1341 = vmatpush2.bf16.msra.mxu0 0
  %1342 = vmatprep.mubr.bf16.mxu0 0
  %1343 = vmatmul.mubr.bf16.gmra.mxu0 %v1308
  %v1344 = vpop.f32.mrf.mxu0
  %v1345 = vadd.f32 0.0, %v1344
  %v1346 = vpop.f32.mrf.mxu0
  %v1347 = vpop.f32.mrf.mxu0
  %v1348 = vpop.f32.mrf.mxu0
  %1349 = vdwg.mxu0
  %v1350 = vadd.f32 %v1302, %v1345
  %v1351 = vxor.u32 %v1350, 2147483648
  %v1352 = vmul.f32 %v1351, 1.442695
  %v1353 = vpow.pop %v1352
  %v1354 = vadd.f32 %v1353, 1.0
  %v1355 = vrcp.pop %v1354
  %v1356 = vmul.f32 1.0, %v1355
  %v1357 = vtanh.pop %v1350
  %v1358 = vmul.f32 %v1356, %v1209
  %1360 = vrot.lane.b32.xlu0 %v1357, 64
  %v1361 = vpop.permute.xlu0 %1360
  %v1363 = vmul.f32 %v1356, %v1361
  %1365 = vrot.lane.b32.xlu0 %v1363, 32
  %v1366 = vpop.permute.xlu0 %1365
  %v1368 = vadd.f32 %v1358, %v1366
  %v1369 = vtanh.pop %v1368
  %1371 = vrot.lane.b32.xlu0 %v1369, 64
  %v1372 = vpop.permute.xlu0 %1371
  %v1374 = vmul.f32 %v1356, %v1372
  %1376 = vrot.lane.b32.xlu0 %v1374, 32
  %v1377 = vpop.permute.xlu0 %1376
  %1379 = vst.msk [vmem:[%s52] sm:$0xff] %vm91, %v1377
  %1380 = vst.msk [vmem:[#allocation2] sm:$0xff] %vm91, %v1298
  %1382 = vrot.lane.b32.xlu0 %v1289, 96
  %v1383 = vpop.permute.xlu0 %1382
  %1385 = vst.msk [vmem:[#allocation3] sm:$0xff] %vm91, %v1383
  %1386 = vst.msk [vmem:[#allocation4] sm:$0xff] %vm91, %v1377
  %1388 = vrot.lane.b32.xlu0 %v1368, 96
  %v1389 = vpop.permute.xlu0 %1388
  %1391 = vst.msk [vmem:[#allocation5] sm:$0xff] %vm91, %v1389
  %s1392 = ssub.s32 0, 0
  %s1393 = smul.u32 8, %s1392
  %p1394 = scmp.lt.s32.totalorder %s1393, 7
  %s1395 = scalar_select %p1394, %s1393, 7
  %s1396 = smul.addr %s1395, 8
  %s1397 = scalar_lea.vmem %s5, %s1396
  // Predicated region
  $region22: #{rnn_forward.5} parent=0 // pred_check
    _
  $region23: #{rnn_forward.5} parent=0 // pred_check_branch
    %1399 = sbr.rel (0) target = $region25
  $region24: #{rnn_forward.5} parent=0 // pred_region
    _
  $region25: #{rnn_forward.5} parent=0 // pred_fallthru
    _
  // Predicated region
  $region26: #{rnn_forward.5} parent=0 // pred_check
    _
  $region27: #{rnn_forward.5} parent=0 // pred_check_branch
    %1401 = sbr.rel (0) target = $region29
  $region28: #{rnn_forward.5} parent=0 // pred_region
    %s1402 = ssub.s32 0, 0
    %s1403 = smul.u32 8, %s1402
  $region29: #{rnn_forward.5} parent=0 // pred_fallthru
    _
  // Predicated region
  $region30: #{rnn_forward.5} parent=0 // pred_check
    _
  $region31: #{rnn_forward.5} parent=0 // pred_check_branch
    %1405 = sbr.rel (0) target = $region33
  $region32: #{rnn_forward.5} parent=0 // pred_region
    _
  $region33: #{rnn_forward.5} parent=0 // pred_fallthru
    _
  // Predicated region
  $region34: #{rnn_forward.5} parent=0 // pred_check
    _
  $region35: #{rnn_forward.5} parent=0 // pred_check_branch
    %1407 = sbr.rel (0) target = $region37
  $region36: #{rnn_forward.5} parent=0 // pred_region
    %s1408 = ssub.s32 0, 0
    %s1409 = smul.u32 8, %s1408
    %p1410 = scmp.lt.s32.totalorder %s1409, 7
    %s1411 = scalar_select %p1410, %s1409, 7
    %s1412 = smul.addr %s1411, 8
    %s1413 = scalar_lea.vmem %s5, %s1412
  $region37: #{rnn_forward.5} parent=0 // pred_fallthru
    _

</llo_original>
